<compile_context>
chip_gen: v5e
topology: v5e:2x2
jax: 0.10.0
libtpu: 0.0.40
codegen_flags: <defaults>
</compile_context>

<pallas_src>
import numpy as np
import jax
import jax.numpy as jnp
from jax.experimental import pallas as pl
from jax.experimental.pallas import tpu as pltpu

# ----------------------------- model sizes ---------------------------------
B = 2        # batch
V = 16       # num_objs
DV = 32      # obj_dim
BDIM = 6     # b_dim (boxes; unused because counter is None)
S = 8        # seq_length
E = 32       # word-embedding dim
H = 32       # num_hid == q_dim == h_dim (BCNet hidden, k=1)
G = 2        # glimpse (args.gamma)
NTOKEN = 20  # vocab size

# ---------------- packed weight slab layout (rows x 128, f32) ---------------
# every sub-block starts on a row that is a multiple of 8 (sublane-aligned)
GX_R0 = 0                      # rows 0:NTOKEN : emb_table @ W_ih + b_ih  (cols 0:3H)
WH_R0 = 24                     # rows 24:56    : W_hh                     (cols 0:3H)
BHH_R0 = 56                    # row  56       : b_hh                     (cols 0:3H)
VQ_R0 = 64                     # rows 64:96    : [watt_v | watt_q | wb_v0 | wb_v1]
HMAT_R0 = 96                   # rows 96,97    : h_mat[g]                 (cols 0:H)
BPRJ_R0 = 104                  # rows 104,105  : q_prj bias[g]            (cols 0:H)
GLW_R0 = 112                   # rows 112:144  : [wb_q0 | wprj0 | wb_q1 | wprj1]
W_ROWS = 144
W_COLS = 128


# ------------------------------- kernel ------------------------------------
def ban_kernel(q_ref, v_ref, w_ref, o_ref):
    # ---- q_emb.forward_all : single-layer GRU (w_emb gather fused in) --------
    wh = w_ref[WH_R0:WH_R0 + H, :]           # (H, 128), cols 0:3H valid, rest zero
    bhh = w_ref[BHH_R0:BHH_R0 + 1, :]        # (1, 128)

    h = jnp.zeros((B, H), jnp.float32)
    hs = []
    for t in range(S):                       # static unroll, S is small
        # embedding gather fused with the hoisted input matmul: slab rows
        # 0:NTOKEN already hold emb_table @ W_ih + b_ih, so one dynamic row
        # read per (b, t) yields the full input-side gate pre-activation.
        gx = jnp.concatenate(
            [w_ref[pl.ds(q_ref[bi, t], 1), :] for bi in range(B)], axis=0)   # (B, 128)
        gh = jnp.dot(h, wh, preferred_element_type=jnp.float32) + bhh        # (B, 128)
        rz = jax.nn.sigmoid(gx[:, 0:2 * H] + gh[:, 0:2 * H])                 # fused r/z
        r = rz[:, 0:H]
        z = rz[:, H:2 * H]
        n = jnp.tanh(gx[:, 2 * H:3 * H] + r * gh[:, 2 * H:3 * H])            # b_hn inside r*( )
        h = (1.0 - z) * n + z * h
        hs.append(h)
    q_seq = jnp.stack(hs, axis=1)            # (B, S, H) — single relayout after loop

    # ---- fused v_att / b_net projections: one MXU push -----------------------
    # (B*V + B*S, 32) @ (32, 128) with W = [watt_v | watt_q | wb_v0 | wb_v1]
    w_vq = w_ref[VQ_R0:VQ_R0 + DV, :]                     # (32, 128)
    v_flat = v_ref[...].reshape(B * V, DV)                # (32, 32)
    q_flat = q_seq.reshape(B * S, H)                      # (16, 32)
    comb_in = jnp.concatenate([v_flat, q_flat], axis=0)   # (48, 32)
    comb_out = jax.nn.relu(jnp.dot(comb_in, w_vq,
                                   preferred_element_type=jnp.float32))      # (48, 128)
    v_p = comb_out[0:B * V, 0:H].reshape(B, V, H)                 # v_att v-proj
    q_p = comb_out[B * V:B * V + B * S, H:2 * H].reshape(B, S, H)  # v_att q-proj
    v_b_all = comb_out[0:B * V, 2 * H:2 * H + G * H].reshape(B, V, G * H)  # b_net v-proj (glimpse-fused)

    # ---- v_att.forward_all : glimpse-fused bilinear logits + softmax ---------
    hmat_rows = w_ref[HMAT_R0:HMAT_R0 + G, :]                       # (G, 128)
    q_p_sc = jnp.concatenate(
        [q_p * hmat_rows[g:g + 1, 0:H].reshape(1, 1, H) for g in range(G)],
        axis=1)                                                     # (B, G*S, H)
    logits = jnp.einsum('bvh,bkh->bvk', v_p, q_p_sc,
                        preferred_element_type=jnp.float32)         # (B, V, G*S)

    att_list = []
    for g in range(G):
        lg = logits[:, :, g * S:(g + 1) * S]                        # (B, V, S)
        # h_bias add skipped: a per-glimpse constant added to every logit cancels
        # exactly because the softmax normalizes over the full flattened (V*S) set.
        m = jnp.max(jnp.max(lg, axis=2, keepdims=True), axis=1, keepdims=True)
        e = jnp.exp(lg - m)
        s = jnp.sum(jnp.sum(e, axis=2, keepdims=True), axis=1, keepdims=True)
        att_list.append(e / s)                                      # (B, V, S)
        # TODO(synk): logits[:, g].max(2) ("atten") feeds only the counter,
        # which is None in this configuration, so it is skipped.

    # ---- b_net[g].forward_with_weights + q_prj[g] residual loop ---------------
    bprj_rows = w_ref[BPRJ_R0:BPRJ_R0 + G, :]                       # (G, 128)
    glw = w_ref[GLW_R0:GLW_R0 + H, :]                               # (32, 128)
    q_cur = q_seq
    for g in range(G):     # sequential: q_cur carries the residual dependency
        wbq_g = glw[:, 2 * g * H:(2 * g + 1) * H]                   # (H, H)
        wprj_g = glw[:, (2 * g + 1) * H:(2 * g + 2) * H]            # (H, H)
        q_b = jax.nn.relu(jnp.dot(q_cur.reshape(B * S, H), wbq_g,
                                  preferred_element_type=jnp.float32)).reshape(B, S, H)
        t_mat = jnp.einsum('bvs,bsh->bvh', att_list[g], q_b,
                           preferred_element_type=jnp.float32)      # (B, V, H)
        b_emb = jnp.sum(v_b_all[:, :, g * H:(g + 1) * H] * t_mat, axis=1)   # (B, H)
        proj = jax.nn.relu(jnp.dot(b_emb, wprj_g, preferred_element_type=jnp.float32)
                           + bprj_rows[g:g + 1, 0:H])               # (B, H)
        q_cur = q_cur + proj[:, None, :]                            # broadcast over seq

    # ---- q_emb.sum(1) ---------------------------------------------------------
    o_ref[...] = jnp.sum(q_cur, axis=1).astype(o_ref.dtype)         # (B, H)


# ------------------- one-time weight packing (NOT per call) ------------------
def pack_weights(params):
    """Pack all 13 weights into one lane-dense, 8-row-aligned (144, 128) slab."""
    assert NTOKEN <= WH_R0
    gx_table = params["emb_table"] @ params["gru_wx"] + params["gru_b_ih"]   # (NTOKEN, 3H)
    slab = jnp.zeros((W_ROWS, W_COLS), jnp.float32)
    slab = slab.at[GX_R0:GX_R0 + NTOKEN, 0:3 * H].set(gx_table)
    slab = slab.at[WH_R0:WH_R0 + H, 0:3 * H].set(params["gru_wh"])
    slab = slab.at[BHH_R0:BHH_R0 + 1, 0:3 * H].set(params["gru_b_hh"])
    slab = slab.at[VQ_R0:VQ_R0 + DV, :].set(
        jnp.concatenate([params["watt_v"], params["watt_q"]]
                        + [params["wb_v"][g] for g in range(G)], axis=1))
    slab = slab.at[HMAT_R0:HMAT_R0 + G, 0:H].set(params["hmat"])
    slab = slab.at[BPRJ_R0:BPRJ_R0 + G, 0:H].set(params["bprj"])
    slab = slab.at[GLW_R0:GLW_R0 + H, :].set(
        jnp.concatenate([jnp.concatenate([params["wb_q"][g], params["wprj"][g]], axis=1)
                         for g in range(G)], axis=1))
    return slab


# ------------------------------ forward wrapper ------------------------------
@jax.jit
def ban_forward(v, b, q, w_slab):
    """v:[B,V,DV] f32, b:[B,V,BDIM] f32 (unused, counter=None), q:[B,S] int32,
    w_slab: pre-packed (W_ROWS, 128) f32 weight slab (built once by pack_weights)."""
    del b  # only feeds the counter branch, which is None in this configuration
    return pl.pallas_call(
        ban_kernel,
        out_shape=jax.ShapeDtypeStruct((B, H), jnp.float32),
        in_specs=[
            pl.BlockSpec(memory_space=pltpu.MemorySpace.SMEM),   # q token ids (scalar reads)
            pl.BlockSpec(memory_space=pltpu.MemorySpace.VMEM),   # v features
            pl.BlockSpec(memory_space=pltpu.MemorySpace.VMEM),   # packed weight slab
        ],
        out_specs=pl.BlockSpec(memory_space=pltpu.MemorySpace.VMEM),
    )(q, v, w_slab)


# ------------------------ pure-JAX reference (checking) ----------------------
def ban_reference(v, q, params):
    wemb = jnp.take(params["emb_table"], q, axis=0)
    outs = []
    for bi in range(B):
        x_all = wemb[bi]
        h = jnp.zeros((1, H), jnp.float32)
        hs = []
        for t in range(S):
            x_t = x_all[t:t + 1, :]
            gx = x_t @ params["gru_wx"] + params["gru_b_ih"]
            gh = h @ params["gru_wh"] + params["gru_b_hh"]
            r = jax.nn.sigmoid(gx[:, 0:H] + gh[:, 0:H])
            z = jax.nn.sigmoid(gx[:, H:2 * H] + gh[:, H:2 * H])
            n = jnp.tanh(gx[:, 2 * H:3 * H] + r * gh[:, 2 * H:3 * H])
            h = (1.0 - z) * n + z * h
            hs.append(h)
        q_seq = jnp.concatenate(hs, axis=0)
        v_mat = v[bi]
        v_p = jax.nn.relu(v_mat @ params["watt_v"])
        q_p = jax.nn.relu(q_seq @ params["watt_q"])
        att_list = []
        for g in range(G):
            lg = (v_p * params["hmat"][g][None, :]) @ q_p.T + params["hbias"][g, 0]
            e = jnp.exp(lg - jnp.max(lg))
            att_list.append(e / jnp.sum(e))
        q_cur = q_seq
        for g in range(G):
            v_b = jax.nn.relu(v_mat @ params["wb_v"][g])
            q_b = jax.nn.relu(q_cur @ params["wb_q"][g])
            b_emb = jnp.sum(v_b * (att_list[g] @ q_b), axis=0, keepdims=True)
            proj = jax.nn.relu(b_emb @ params["wprj"][g] + params["bprj"][g:g + 1, :])
            q_cur = q_cur + proj
        outs.append(jnp.sum(q_cur, axis=0))
    return jnp.stack(outs, axis=0)


# --------------------------------- main --------------------------------------
def _init_params(key):
    ks = jax.random.split(key, 14)
    sc = 0.1
    return {
        "emb_table": sc * jax.random.normal(ks[0], (NTOKEN, E), jnp.float32),
        "gru_wx":    sc * jax.random.normal(ks[1], (E, 3 * H), jnp.float32),
        "gru_wh":    sc * jax.random.normal(ks[2], (H, 3 * H), jnp.float32),
        "gru_b_ih":  sc * jax.random.normal(ks[3], (1, 3 * H), jnp.float32),
        "gru_b_hh":  sc * jax.random.normal(ks[4], (1, 3 * H), jnp.float32),
        "watt_v":    sc * jax.random.normal(ks[5], (DV, H), jnp.float32),
        "watt_q":    sc * jax.random.normal(ks[6], (H, H), jnp.float32),
        "hmat":      sc * jax.random.normal(ks[7], (G, H), jnp.float32),
        "hbias":     sc * jax.random.normal(ks[8], (G, 1), jnp.float32),
        "wb_v":      sc * jax.random.normal(ks[9], (G, DV, H), jnp.float32),
        "wb_q":      sc * jax.random.normal(ks[10], (G, H, H), jnp.float32),
        "wprj":      sc * jax.random.normal(ks[11], (G, H, H), jnp.float32),
        "bprj":      sc * jax.random.normal(ks[12], (G, H), jnp.float32),
    }


if __name__ == "__main__":
    key = jax.random.PRNGKey(0)
    kp, kv, kb, kq = jax.random.split(key, 4)
    params = _init_params(kp)

    v = jax.random.normal(kv, (B, V, DV), jnp.float32)
    b = jax.random.normal(kb, (B, V, BDIM), jnp.float32)   # unused (counter=None)
    q = jax.random.randint(kq, (B, S), 0, NTOKEN, jnp.int32)

    # one-time parameter preparation (hoisted out of the per-call path)
    w_slab = jax.block_until_ready(pack_weights(params))

    out = ban_forward(v, b, q, w_slab)
    out = jax.block_until_ready(out)

    ref = ban_reference(v, q, params)
    np.testing.assert_allclose(np.asarray(out), np.asarray(ref),
                               rtol=1e-3, atol=1e-3)
    print("KERNEL_OK")
</pallas_src>

<mosaic_0001>
module attributes {stable_mosaic.version = 11 : i64} {
  func.func @ban_kernel(%arg0: memref<2x8xi32, #tpu.memory_space<smem>>, %arg1: memref<2x16x32xf32, #tpu.memory_space<vmem>>, %arg2: memref<144x128xf32, #tpu.memory_space<vmem>>, %arg3: memref<2x32xf32, #tpu.memory_space<vmem>>) attributes {dimension_semantics = [], scalar_prefetch = 0 : i64, scratch_operands = 0 : i64, tpu.core_type = #tpu.core_type<tc>} {
    %c24 = arith.constant 24 : index
    %c0 = arith.constant 0 : index
    %0 = vector.load %arg2[%c24, %c0] : memref<144x128xf32, #tpu.memory_space<vmem>>, vector<32x128xf32>
    %c56 = arith.constant 56 : index
    %c0_0 = arith.constant 0 : index
    %1 = vector.load %arg2[%c56, %c0_0] : memref<144x128xf32, #tpu.memory_space<vmem>>, vector<1x128xf32>
    %cst = arith.constant 0.000000e+00 : f32
    %2 = vector.broadcast %cst : f32 to vector<2x32xf32>
    %c0_1 = arith.constant 0 : index
    %c0_2 = arith.constant 0 : index
    %3 = memref.load %arg0[%c0_1, %c0_2] : memref<2x8xi32, #tpu.memory_space<smem>>
    %4 = arith.index_cast %3 : i32 to index
    %c0_3 = arith.constant 0 : index
    %5 = vector.load %arg2[%4, %c0_3] : memref<144x128xf32, #tpu.memory_space<vmem>>, vector<1x128xf32>
    %c1 = arith.constant 1 : index
    %c0_4 = arith.constant 0 : index
    %6 = memref.load %arg0[%c1, %c0_4] : memref<2x8xi32, #tpu.memory_space<smem>>
    %7 = arith.index_cast %6 : i32 to index
    %c0_5 = arith.constant 0 : index
    %8 = vector.load %arg2[%7, %c0_5] : memref<144x128xf32, #tpu.memory_space<vmem>>, vector<1x128xf32>
    %9 = tpu.concatenate %5, %8 in 0 : vector<1x128xf32>, vector<1x128xf32> -> vector<2x128xf32>
    %cst_6 = arith.constant dense<0.000000e+00> : vector<2x128xf32>
    %10 = tpu.matmul %2, %0, %cst_6 {dimension_numbers = #tpu.dot_dimension_numbers<[1], [0], [0], [1], [0, 0, 1, 1], [], []>} : vector<2x32xf32>, vector<32x128xf32>, vector<2x128xf32> -> vector<2x128xf32>
    %11 = vector.broadcast %1 : vector<1x128xf32> to vector<2x128xf32>
    %12 = arith.addf %10, %11 : vector<2x128xf32>
    %13 = vector.extract_strided_slice %9 {offsets = [0, 0], sizes = [2, 64], strides = [1, 1]} : vector<2x128xf32> to vector<2x64xf32>
    %14 = vector.extract_strided_slice %12 {offsets = [0, 0], sizes = [2, 64], strides = [1, 1]} : vector<2x128xf32> to vector<2x64xf32>
    %15 = arith.addf %13, %14 : vector<2x64xf32>
    %16 = arith.negf %15 : vector<2x64xf32>
    %17 = math.exp %16 : vector<2x64xf32>
    %cst_7 = arith.constant 1.000000e+00 : f32
    %18 = vector.broadcast %cst_7 : f32 to vector<2x64xf32>
    %19 = arith.addf %18, %17 : vector<2x64xf32>
    %20 = arith.divf %18, %19 : vector<2x64xf32>
    %21 = vector.extract_strided_slice %20 {offsets = [0, 0], sizes = [2, 32], strides = [1, 1]} : vector<2x64xf32> to vector<2x32xf32>
    %22 = vector.extract_strided_slice %20 {offsets = [0, 32], sizes = [2, 32], strides = [1, 1]} : vector<2x64xf32> to vector<2x32xf32>
    %23 = vector.extract_strided_slice %9 {offsets = [0, 64], sizes = [2, 32], strides = [1, 1]} : vector<2x128xf32> to vector<2x32xf32>
    %24 = vector.extract_strided_slice %12 {offsets = [0, 64], sizes = [2, 32], strides = [1, 1]} : vector<2x128xf32> to vector<2x32xf32>
    %25 = arith.mulf %21, %24 : vector<2x32xf32>
    %26 = arith.addf %23, %25 : vector<2x32xf32>
    %27 = math.tanh %26 : vector<2x32xf32>
    %cst_8 = arith.constant 1.000000e+00 : f32
    %28 = vector.broadcast %cst_8 : f32 to vector<2x32xf32>
    %29 = arith.subf %28, %22 : vector<2x32xf32>
    %30 = arith.mulf %29, %27 : vector<2x32xf32>
    %31 = arith.mulf %22, %2 : vector<2x32xf32>
    %32 = arith.addf %30, %31 : vector<2x32xf32>
    %c0_9 = arith.constant 0 : index
    %c1_10 = arith.constant 1 : index
    %33 = memref.load %arg0[%c0_9, %c1_10] : memref<2x8xi32, #tpu.memory_space<smem>>
    %34 = arith.index_cast %33 : i32 to index
    %c0_11 = arith.constant 0 : index
    %35 = vector.load %arg2[%34, %c0_11] : memref<144x128xf32, #tpu.memory_space<vmem>>, vector<1x128xf32>
    %c1_12 = arith.constant 1 : index
    %c1_13 = arith.constant 1 : index
    %36 = memref.load %arg0[%c1_12, %c1_13] : memref<2x8xi32, #tpu.memory_space<smem>>
    %37 = arith.index_cast %36 : i32 to index
    %c0_14 = arith.constant 0 : index
    %38 = vector.load %arg2[%37, %c0_14] : memref<144x128xf32, #tpu.memory_space<vmem>>, vector<1x128xf32>
    %39 = tpu.concatenate %35, %38 in 0 : vector<1x128xf32>, vector<1x128xf32> -> vector<2x128xf32>
    %cst_15 = arith.constant dense<0.000000e+00> : vector<2x128xf32>
    %40 = tpu.matmul %32, %0, %cst_15 {dimension_numbers = #tpu.dot_dimension_numbers<[1], [0], [0], [1], [0, 0, 1, 1], [], []>} : vector<2x32xf32>, vector<32x128xf32>, vector<2x128xf32> -> vector<2x128xf32>
    %41 = vector.broadcast %1 : vector<1x128xf32> to vector<2x128xf32>
    %42 = arith.addf %40, %41 : vector<2x128xf32>
    %43 = vector.extract_strided_slice %39 {offsets = [0, 0], sizes = [2, 64], strides = [1, 1]} : vector<2x128xf32> to vector<2x64xf32>
    %44 = vector.extract_strided_slice %42 {offsets = [0, 0], sizes = [2, 64], strides = [1, 1]} : vector<2x128xf32> to vector<2x64xf32>
    %45 = arith.addf %43, %44 : vector<2x64xf32>
    %46 = arith.negf %45 : vector<2x64xf32>
    %47 = math.exp %46 : vector<2x64xf32>
    %cst_16 = arith.constant 1.000000e+00 : f32
    %48 = vector.broadcast %cst_16 : f32 to vector<2x64xf32>
    %49 = arith.addf %48, %47 : vector<2x64xf32>
    %50 = arith.divf %48, %49 : vector<2x64xf32>
    %51 = vector.extract_strided_slice %50 {offsets = [0, 0], sizes = [2, 32], strides = [1, 1]} : vector<2x64xf32> to vector<2x32xf32>
    %52 = vector.extract_strided_slice %50 {offsets = [0, 32], sizes = [2, 32], strides = [1, 1]} : vector<2x64xf32> to vector<2x32xf32>
    %53 = vector.extract_strided_slice %39 {offsets = [0, 64], sizes = [2, 32], strides = [1, 1]} : vector<2x128xf32> to vector<2x32xf32>
    %54 = vector.extract_strided_slice %42 {offsets = [0, 64], sizes = [2, 32], strides = [1, 1]} : vector<2x128xf32> to vector<2x32xf32>
    %55 = arith.mulf %51, %54 : vector<2x32xf32>
    %56 = arith.addf %53, %55 : vector<2x32xf32>
    %57 = math.tanh %56 : vector<2x32xf32>
    %cst_17 = arith.constant 1.000000e+00 : f32
    %58 = vector.broadcast %cst_17 : f32 to vector<2x32xf32>
    %59 = arith.subf %58, %52 : vector<2x32xf32>
    %60 = arith.mulf %59, %57 : vector<2x32xf32>
    %61 = arith.mulf %52, %32 : vector<2x32xf32>
    %62 = arith.addf %60, %61 : vector<2x32xf32>
    %c0_18 = arith.constant 0 : index
    %c2 = arith.constant 2 : index
    %63 = memref.load %arg0[%c0_18, %c2] : memref<2x8xi32, #tpu.memory_space<smem>>
    %64 = arith.index_cast %63 : i32 to index
    %c0_19 = arith.constant 0 : index
    %65 = vector.load %arg2[%64, %c0_19] : memref<144x128xf32, #tpu.memory_space<vmem>>, vector<1x128xf32>
    %c1_20 = arith.constant 1 : index
    %c2_21 = arith.constant 2 : index
    %66 = memref.load %arg0[%c1_20, %c2_21] : memref<2x8xi32, #tpu.memory_space<smem>>
    %67 = arith.index_cast %66 : i32 to index
    %c0_22 = arith.constant 0 : index
    %68 = vector.load %arg2[%67, %c0_22] : memref<144x128xf32, #tpu.memory_space<vmem>>, vector<1x128xf32>
    %69 = tpu.concatenate %65, %68 in 0 : vector<1x128xf32>, vector<1x128xf32> -> vector<2x128xf32>
    %cst_23 = arith.constant dense<0.000000e+00> : vector<2x128xf32>
    %70 = tpu.matmul %62, %0, %cst_23 {dimension_numbers = #tpu.dot_dimension_numbers<[1], [0], [0], [1], [0, 0, 1, 1], [], []>} : vector<2x32xf32>, vector<32x128xf32>, vector<2x128xf32> -> vector<2x128xf32>
    %71 = vector.broadcast %1 : vector<1x128xf32> to vector<2x128xf32>
    %72 = arith.addf %70, %71 : vector<2x128xf32>
    %73 = vector.extract_strided_slice %69 {offsets = [0, 0], sizes = [2, 64], strides = [1, 1]} : vector<2x128xf32> to vector<2x64xf32>
    %74 = vector.extract_strided_slice %72 {offsets = [0, 0], sizes = [2, 64], strides = [1, 1]} : vector<2x128xf32> to vector<2x64xf32>
    %75 = arith.addf %73, %74 : vector<2x64xf32>
    %76 = arith.negf %75 : vector<2x64xf32>
    %77 = math.exp %76 : vector<2x64xf32>
    %cst_24 = arith.constant 1.000000e+00 : f32
    %78 = vector.broadcast %cst_24 : f32 to vector<2x64xf32>
    %79 = arith.addf %78, %77 : vector<2x64xf32>
    %80 = arith.divf %78, %79 : vector<2x64xf32>
    %81 = vector.extract_strided_slice %80 {offsets = [0, 0], sizes = [2, 32], strides = [1, 1]} : vector<2x64xf32> to vector<2x32xf32>
    %82 = vector.extract_strided_slice %80 {offsets = [0, 32], sizes = [2, 32], strides = [1, 1]} : vector<2x64xf32> to vector<2x32xf32>
    %83 = vector.extract_strided_slice %69 {offsets = [0, 64], sizes = [2, 32], strides = [1, 1]} : vector<2x128xf32> to vector<2x32xf32>
    %84 = vector.extract_strided_slice %72 {offsets = [0, 64], sizes = [2, 32], strides = [1, 1]} : vector<2x128xf32> to vector<2x32xf32>
    %85 = arith.mulf %81, %84 : vector<2x32xf32>
    %86 = arith.addf %83, %85 : vector<2x32xf32>
    %87 = math.tanh %86 : vector<2x32xf32>
    %cst_25 = arith.constant 1.000000e+00 : f32
    %88 = vector.broadcast %cst_25 : f32 to vector<2x32xf32>
    %89 = arith.subf %88, %82 : vector<2x32xf32>
    %90 = arith.mulf %89, %87 : vector<2x32xf32>
    %91 = arith.mulf %82, %62 : vector<2x32xf32>
    %92 = arith.addf %90, %91 : vector<2x32xf32>
    %c0_26 = arith.constant 0 : index
    %c3 = arith.constant 3 : index
    %93 = memref.load %arg0[%c0_26, %c3] : memref<2x8xi32, #tpu.memory_space<smem>>
    %94 = arith.index_cast %93 : i32 to index
    %c0_27 = arith.constant 0 : index
    %95 = vector.load %arg2[%94, %c0_27] : memref<144x128xf32, #tpu.memory_space<vmem>>, vector<1x128xf32>
    %c1_28 = arith.constant 1 : index
    %c3_29 = arith.constant 3 : index
    %96 = memref.load %arg0[%c1_28, %c3_29] : memref<2x8xi32, #tpu.memory_space<smem>>
    %97 = arith.index_cast %96 : i32 to index
    %c0_30 = arith.constant 0 : index
    %98 = vector.load %arg2[%97, %c0_30] : memref<144x128xf32, #tpu.memory_space<vmem>>, vector<1x128xf32>
    %99 = tpu.concatenate %95, %98 in 0 : vector<1x128xf32>, vector<1x128xf32> -> vector<2x128xf32>
    %cst_31 = arith.constant dense<0.000000e+00> : vector<2x128xf32>
    %100 = tpu.matmul %92, %0, %cst_31 {dimension_numbers = #tpu.dot_dimension_numbers<[1], [0], [0], [1], [0, 0, 1, 1], [], []>} : vector<2x32xf32>, vector<32x128xf32>, vector<2x128xf32> -> vector<2x128xf32>
    %101 = vector.broadcast %1 : vector<1x128xf32> to vector<2x128xf32>
    %102 = arith.addf %100, %101 : vector<2x128xf32>
    %103 = vector.extract_strided_slice %99 {offsets = [0, 0], sizes = [2, 64], strides = [1, 1]} : vector<2x128xf32> to vector<2x64xf32>
    %104 = vector.extract_strided_slice %102 {offsets = [0, 0], sizes = [2, 64], strides = [1, 1]} : vector<2x128xf32> to vector<2x64xf32>
    %105 = arith.addf %103, %104 : vector<2x64xf32>
    %106 = arith.negf %105 : vector<2x64xf32>
    %107 = math.exp %106 : vector<2x64xf32>
    %cst_32 = arith.constant 1.000000e+00 : f32
    %108 = vector.broadcast %cst_32 : f32 to vector<2x64xf32>
    %109 = arith.addf %108, %107 : vector<2x64xf32>
    %110 = arith.divf %108, %109 : vector<2x64xf32>
    %111 = vector.extract_strided_slice %110 {offsets = [0, 0], sizes = [2, 32], strides = [1, 1]} : vector<2x64xf32> to vector<2x32xf32>
    %112 = vector.extract_strided_slice %110 {offsets = [0, 32], sizes = [2, 32], strides = [1, 1]} : vector<2x64xf32> to vector<2x32xf32>
    %113 = vector.extract_strided_slice %99 {offsets = [0, 64], sizes = [2, 32], strides = [1, 1]} : vector<2x128xf32> to vector<2x32xf32>
    %114 = vector.extract_strided_slice %102 {offsets = [0, 64], sizes = [2, 32], strides = [1, 1]} : vector<2x128xf32> to vector<2x32xf32>
    %115 = arith.mulf %111, %114 : vector<2x32xf32>
    %116 = arith.addf %113, %115 : vector<2x32xf32>
    %117 = math.tanh %116 : vector<2x32xf32>
    %cst_33 = arith.constant 1.000000e+00 : f32
    %118 = vector.broadcast %cst_33 : f32 to vector<2x32xf32>
    %119 = arith.subf %118, %112 : vector<2x32xf32>
    %120 = arith.mulf %119, %117 : vector<2x32xf32>
    %121 = arith.mulf %112, %92 : vector<2x32xf32>
    %122 = arith.addf %120, %121 : vector<2x32xf32>
    %c0_34 = arith.constant 0 : index
    %c4 = arith.constant 4 : index
    %123 = memref.load %arg0[%c0_34, %c4] : memref<2x8xi32, #tpu.memory_space<smem>>
    %124 = arith.index_cast %123 : i32 to index
    %c0_35 = arith.constant 0 : index
    %125 = vector.load %arg2[%124, %c0_35] : memref<144x128xf32, #tpu.memory_space<vmem>>, vector<1x128xf32>
    %c1_36 = arith.constant 1 : index
    %c4_37 = arith.constant 4 : index
    %126 = memref.load %arg0[%c1_36, %c4_37] : memref<2x8xi32, #tpu.memory_space<smem>>
    %127 = arith.index_cast %126 : i32 to index
    %c0_38 = arith.constant 0 : index
    %128 = vector.load %arg2[%127, %c0_38] : memref<144x128xf32, #tpu.memory_space<vmem>>, vector<1x128xf32>
    %129 = tpu.concatenate %125, %128 in 0 : vector<1x128xf32>, vector<1x128xf32> -> vector<2x128xf32>
    %cst_39 = arith.constant dense<0.000000e+00> : vector<2x128xf32>
    %130 = tpu.matmul %122, %0, %cst_39 {dimension_numbers = #tpu.dot_dimension_numbers<[1], [0], [0], [1], [0, 0, 1, 1], [], []>} : vector<2x32xf32>, vector<32x128xf32>, vector<2x128xf32> -> vector<2x128xf32>
    %131 = vector.broadcast %1 : vector<1x128xf32> to vector<2x128xf32>
    %132 = arith.addf %130, %131 : vector<2x128xf32>
    %133 = vector.extract_strided_slice %129 {offsets = [0, 0], sizes = [2, 64], strides = [1, 1]} : vector<2x128xf32> to vector<2x64xf32>
    %134 = vector.extract_strided_slice %132 {offsets = [0, 0], sizes = [2, 64], strides = [1, 1]} : vector<2x128xf32> to vector<2x64xf32>
    %135 = arith.addf %133, %134 : vector<2x64xf32>
    %136 = arith.negf %135 : vector<2x64xf32>
    %137 = math.exp %136 : vector<2x64xf32>
    %cst_40 = arith.constant 1.000000e+00 : f32
    %138 = vector.broadcast %cst_40 : f32 to vector<2x64xf32>
    %139 = arith.addf %138, %137 : vector<2x64xf32>
    %140 = arith.divf %138, %139 : vector<2x64xf32>
    %141 = vector.extract_strided_slice %140 {offsets = [0, 0], sizes = [2, 32], strides = [1, 1]} : vector<2x64xf32> to vector<2x32xf32>
    %142 = vector.extract_strided_slice %140 {offsets = [0, 32], sizes = [2, 32], strides = [1, 1]} : vector<2x64xf32> to vector<2x32xf32>
    %143 = vector.extract_strided_slice %129 {offsets = [0, 64], sizes = [2, 32], strides = [1, 1]} : vector<2x128xf32> to vector<2x32xf32>
    %144 = vector.extract_strided_slice %132 {offsets = [0, 64], sizes = [2, 32], strides = [1, 1]} : vector<2x128xf32> to vector<2x32xf32>
    %145 = arith.mulf %141, %144 : vector<2x32xf32>
    %146 = arith.addf %143, %145 : vector<2x32xf32>
    %147 = math.tanh %146 : vector<2x32xf32>
    %cst_41 = arith.constant 1.000000e+00 : f32
    %148 = vector.broadcast %cst_41 : f32 to vector<2x32xf32>
    %149 = arith.subf %148, %142 : vector<2x32xf32>
    %150 = arith.mulf %149, %147 : vector<2x32xf32>
    %151 = arith.mulf %142, %122 : vector<2x32xf32>
    %152 = arith.addf %150, %151 : vector<2x32xf32>
    %c0_42 = arith.constant 0 : index
    %c5 = arith.constant 5 : index
    %153 = memref.load %arg0[%c0_42, %c5] : memref<2x8xi32, #tpu.memory_space<smem>>
    %154 = arith.index_cast %153 : i32 to index
    %c0_43 = arith.constant 0 : index
    %155 = vector.load %arg2[%154, %c0_43] : memref<144x128xf32, #tpu.memory_space<vmem>>, vector<1x128xf32>
    %c1_44 = arith.constant 1 : index
    %c5_45 = arith.constant 5 : index
    %156 = memref.load %arg0[%c1_44, %c5_45] : memref<2x8xi32, #tpu.memory_space<smem>>
    %157 = arith.index_cast %156 : i32 to index
    %c0_46 = arith.constant 0 : index
    %158 = vector.load %arg2[%157, %c0_46] : memref<144x128xf32, #tpu.memory_space<vmem>>, vector<1x128xf32>
    %159 = tpu.concatenate %155, %158 in 0 : vector<1x128xf32>, vector<1x128xf32> -> vector<2x128xf32>
    %cst_47 = arith.constant dense<0.000000e+00> : vector<2x128xf32>
    %160 = tpu.matmul %152, %0, %cst_47 {dimension_numbers = #tpu.dot_dimension_numbers<[1], [0], [0], [1], [0, 0, 1, 1], [], []>} : vector<2x32xf32>, vector<32x128xf32>, vector<2x128xf32> -> vector<2x128xf32>
    %161 = vector.broadcast %1 : vector<1x128xf32> to vector<2x128xf32>
    %162 = arith.addf %160, %161 : vector<2x128xf32>
    %163 = vector.extract_strided_slice %159 {offsets = [0, 0], sizes = [2, 64], strides = [1, 1]} : vector<2x128xf32> to vector<2x64xf32>
    %164 = vector.extract_strided_slice %162 {offsets = [0, 0], sizes = [2, 64], strides = [1, 1]} : vector<2x128xf32> to vector<2x64xf32>
    %165 = arith.addf %163, %164 : vector<2x64xf32>
    %166 = arith.negf %165 : vector<2x64xf32>
    %167 = math.exp %166 : vector<2x64xf32>
    %cst_48 = arith.constant 1.000000e+00 : f32
    %168 = vector.broadcast %cst_48 : f32 to vector<2x64xf32>
    %169 = arith.addf %168, %167 : vector<2x64xf32>
    %170 = arith.divf %168, %169 : vector<2x64xf32>
    %171 = vector.extract_strided_slice %170 {offsets = [0, 0], sizes = [2, 32], strides = [1, 1]} : vector<2x64xf32> to vector<2x32xf32>
    %172 = vector.extract_strided_slice %170 {offsets = [0, 32], sizes = [2, 32], strides = [1, 1]} : vector<2x64xf32> to vector<2x32xf32>
    %173 = vector.extract_strided_slice %159 {offsets = [0, 64], sizes = [2, 32], strides = [1, 1]} : vector<2x128xf32> to vector<2x32xf32>
    %174 = vector.extract_strided_slice %162 {offsets = [0, 64], sizes = [2, 32], strides = [1, 1]} : vector<2x128xf32> to vector<2x32xf32>
    %175 = arith.mulf %171, %174 : vector<2x32xf32>
    %176 = arith.addf %173, %175 : vector<2x32xf32>
    %177 = math.tanh %176 : vector<2x32xf32>
    %cst_49 = arith.constant 1.000000e+00 : f32
    %178 = vector.broadcast %cst_49 : f32 to vector<2x32xf32>
    %179 = arith.subf %178, %172 : vector<2x32xf32>
    %180 = arith.mulf %179, %177 : vector<2x32xf32>
    %181 = arith.mulf %172, %152 : vector<2x32xf32>
    %182 = arith.addf %180, %181 : vector<2x32xf32>
    %c0_50 = arith.constant 0 : index
    %c6 = arith.constant 6 : index
    %183 = memref.load %arg0[%c0_50, %c6] : memref<2x8xi32, #tpu.memory_space<smem>>
    %184 = arith.index_cast %183 : i32 to index
    %c0_51 = arith.constant 0 : index
    %185 = vector.load %arg2[%184, %c0_51] : memref<144x128xf32, #tpu.memory_space<vmem>>, vector<1x128xf32>
    %c1_52 = arith.constant 1 : index
    %c6_53 = arith.constant 6 : index
    %186 = memref.load %arg0[%c1_52, %c6_53] : memref<2x8xi32, #tpu.memory_space<smem>>
    %187 = arith.index_cast %186 : i32 to index
    %c0_54 = arith.constant 0 : index
    %188 = vector.load %arg2[%187, %c0_54] : memref<144x128xf32, #tpu.memory_space<vmem>>, vector<1x128xf32>
    %189 = tpu.concatenate %185, %188 in 0 : vector<1x128xf32>, vector<1x128xf32> -> vector<2x128xf32>
    %cst_55 = arith.constant dense<0.000000e+00> : vector<2x128xf32>
    %190 = tpu.matmul %182, %0, %cst_55 {dimension_numbers = #tpu.dot_dimension_numbers<[1], [0], [0], [1], [0, 0, 1, 1], [], []>} : vector<2x32xf32>, vector<32x128xf32>, vector<2x128xf32> -> vector<2x128xf32>
    %191 = vector.broadcast %1 : vector<1x128xf32> to vector<2x128xf32>
    %192 = arith.addf %190, %191 : vector<2x128xf32>
    %193 = vector.extract_strided_slice %189 {offsets = [0, 0], sizes = [2, 64], strides = [1, 1]} : vector<2x128xf32> to vector<2x64xf32>
    %194 = vector.extract_strided_slice %192 {offsets = [0, 0], sizes = [2, 64], strides = [1, 1]} : vector<2x128xf32> to vector<2x64xf32>
    %195 = arith.addf %193, %194 : vector<2x64xf32>
    %196 = arith.negf %195 : vector<2x64xf32>
    %197 = math.exp %196 : vector<2x64xf32>
    %cst_56 = arith.constant 1.000000e+00 : f32
    %198 = vector.broadcast %cst_56 : f32 to vector<2x64xf32>
    %199 = arith.addf %198, %197 : vector<2x64xf32>
    %200 = arith.divf %198, %199 : vector<2x64xf32>
    %201 = vector.extract_strided_slice %200 {offsets = [0, 0], sizes = [2, 32], strides = [1, 1]} : vector<2x64xf32> to vector<2x32xf32>
    %202 = vector.extract_strided_slice %200 {offsets = [0, 32], sizes = [2, 32], strides = [1, 1]} : vector<2x64xf32> to vector<2x32xf32>
    %203 = vector.extract_strided_slice %189 {offsets = [0, 64], sizes = [2, 32], strides = [1, 1]} : vector<2x128xf32> to vector<2x32xf32>
    %204 = vector.extract_strided_slice %192 {offsets = [0, 64], sizes = [2, 32], strides = [1, 1]} : vector<2x128xf32> to vector<2x32xf32>
    %205 = arith.mulf %201, %204 : vector<2x32xf32>
    %206 = arith.addf %203, %205 : vector<2x32xf32>
    %207 = math.tanh %206 : vector<2x32xf32>
    %cst_57 = arith.constant 1.000000e+00 : f32
    %208 = vector.broadcast %cst_57 : f32 to vector<2x32xf32>
    %209 = arith.subf %208, %202 : vector<2x32xf32>
    %210 = arith.mulf %209, %207 : vector<2x32xf32>
    %211 = arith.mulf %202, %182 : vector<2x32xf32>
    %212 = arith.addf %210, %211 : vector<2x32xf32>
    %c0_58 = arith.constant 0 : index
    %c7 = arith.constant 7 : index
    %213 = memref.load %arg0[%c0_58, %c7] : memref<2x8xi32, #tpu.memory_space<smem>>
    %214 = arith.index_cast %213 : i32 to index
    %c0_59 = arith.constant 0 : index
    %215 = vector.load %arg2[%214, %c0_59] : memref<144x128xf32, #tpu.memory_space<vmem>>, vector<1x128xf32>
    %c1_60 = arith.constant 1 : index
    %c7_61 = arith.constant 7 : index
    %216 = memref.load %arg0[%c1_60, %c7_61] : memref<2x8xi32, #tpu.memory_space<smem>>
    %217 = arith.index_cast %216 : i32 to index
    %c0_62 = arith.constant 0 : index
    %218 = vector.load %arg2[%217, %c0_62] : memref<144x128xf32, #tpu.memory_space<vmem>>, vector<1x128xf32>
    %219 = tpu.concatenate %215, %218 in 0 : vector<1x128xf32>, vector<1x128xf32> -> vector<2x128xf32>
    %cst_63 = arith.constant dense<0.000000e+00> : vector<2x128xf32>
    %220 = tpu.matmul %212, %0, %cst_63 {dimension_numbers = #tpu.dot_dimension_numbers<[1], [0], [0], [1], [0, 0, 1, 1], [], []>} : vector<2x32xf32>, vector<32x128xf32>, vector<2x128xf32> -> vector<2x128xf32>
    %221 = vector.broadcast %1 : vector<1x128xf32> to vector<2x128xf32>
    %222 = arith.addf %220, %221 : vector<2x128xf32>
    %223 = vector.extract_strided_slice %219 {offsets = [0, 0], sizes = [2, 64], strides = [1, 1]} : vector<2x128xf32> to vector<2x64xf32>
    %224 = vector.extract_strided_slice %222 {offsets = [0, 0], sizes = [2, 64], strides = [1, 1]} : vector<2x128xf32> to vector<2x64xf32>
    %225 = arith.addf %223, %224 : vector<2x64xf32>
    %226 = arith.negf %225 : vector<2x64xf32>
    %227 = math.exp %226 : vector<2x64xf32>
    %cst_64 = arith.constant 1.000000e+00 : f32
    %228 = vector.broadcast %cst_64 : f32 to vector<2x64xf32>
    %229 = arith.addf %228, %227 : vector<2x64xf32>
    %230 = arith.divf %228, %229 : vector<2x64xf32>
    %231 = vector.extract_strided_slice %230 {offsets = [0, 0], sizes = [2, 32], strides = [1, 1]} : vector<2x64xf32> to vector<2x32xf32>
    %232 = vector.extract_strided_slice %230 {offsets = [0, 32], sizes = [2, 32], strides = [1, 1]} : vector<2x64xf32> to vector<2x32xf32>
    %233 = vector.extract_strided_slice %219 {offsets = [0, 64], sizes = [2, 32], strides = [1, 1]} : vector<2x128xf32> to vector<2x32xf32>
    %234 = vector.extract_strided_slice %222 {offsets = [0, 64], sizes = [2, 32], strides = [1, 1]} : vector<2x128xf32> to vector<2x32xf32>
    %235 = arith.mulf %231, %234 : vector<2x32xf32>
    %236 = arith.addf %233, %235 : vector<2x32xf32>
    %237 = math.tanh %236 : vector<2x32xf32>
    %cst_65 = arith.constant 1.000000e+00 : f32
    %238 = vector.broadcast %cst_65 : f32 to vector<2x32xf32>
    %239 = arith.subf %238, %232 : vector<2x32xf32>
    %240 = arith.mulf %239, %237 : vector<2x32xf32>
    %241 = arith.mulf %232, %212 : vector<2x32xf32>
    %242 = arith.addf %240, %241 : vector<2x32xf32>
    %243 = vector.shape_cast %32 : vector<2x32xf32> to vector<2x1x32xf32>
    %244 = vector.shape_cast %62 : vector<2x32xf32> to vector<2x1x32xf32>
    %245 = vector.shape_cast %92 : vector<2x32xf32> to vector<2x1x32xf32>
    %246 = vector.shape_cast %122 : vector<2x32xf32> to vector<2x1x32xf32>
    %247 = vector.shape_cast %152 : vector<2x32xf32> to vector<2x1x32xf32>
    %248 = vector.shape_cast %182 : vector<2x32xf32> to vector<2x1x32xf32>
    %249 = vector.shape_cast %212 : vector<2x32xf32> to vector<2x1x32xf32>
    %250 = vector.shape_cast %242 : vector<2x32xf32> to vector<2x1x32xf32>
    %251 = tpu.concatenate %243, %244, %245, %246, %247, %248, %249, %250 in 1 : vector<2x1x32xf32>, vector<2x1x32xf32>, vector<2x1x32xf32>, vector<2x1x32xf32>, vector<2x1x32xf32>, vector<2x1x32xf32>, vector<2x1x32xf32>, vector<2x1x32xf32> -> vector<2x8x32xf32>
    %c64 = arith.constant 64 : index
    %c0_66 = arith.constant 0 : index
    %252 = vector.load %arg2[%c64, %c0_66] : memref<144x128xf32, #tpu.memory_space<vmem>>, vector<32x128xf32>
    %c0_67 = arith.constant 0 : index
    %c0_68 = arith.constant 0 : index
    %c0_69 = arith.constant 0 : index
    %253 = vector.load %arg1[%c0_67, %c0_68, %c0_69] : memref<2x16x32xf32, #tpu.memory_space<vmem>>, vector<2x16x32xf32>
    %254 = vector.shape_cast %253 : vector<2x16x32xf32> to vector<32x32xf32>
    %255 = vector.shape_cast %251 : vector<2x8x32xf32> to vector<16x32xf32>
    %256 = tpu.concatenate %254, %255 in 0 : vector<32x32xf32>, vector<16x32xf32> -> vector<48x32xf32>
    %cst_70 = arith.constant dense<0.000000e+00> : vector<48x128xf32>
    %257 = tpu.matmul %256, %252, %cst_70 {dimension_numbers = #tpu.dot_dimension_numbers<[1], [0], [0], [1], [0, 0, 1, 1], [], []>} : vector<48x32xf32>, vector<32x128xf32>, vector<48x128xf32> -> vector<48x128xf32>
    %cst_71 = arith.constant 0.000000e+00 : f32
    %258 = vector.broadcast %cst_71 : f32 to vector<48x128xf32>
    %259 = arith.maximumf %257, %258 : vector<48x128xf32>
    %260 = vector.extract_strided_slice %259 {offsets = [0, 0], sizes = [32, 32], strides = [1, 1]} : vector<48x128xf32> to vector<32x32xf32>
    %261 = vector.shape_cast %260 : vector<32x32xf32> to vector<2x16x32xf32>
    %262 = vector.extract_strided_slice %259 {offsets = [32, 32], sizes = [16, 32], strides = [1, 1]} : vector<48x128xf32> to vector<16x32xf32>
    %263 = vector.shape_cast %262 : vector<16x32xf32> to vector<2x8x32xf32>
    %264 = vector.extract_strided_slice %259 {offsets = [0, 64], sizes = [32, 64], strides = [1, 1]} : vector<48x128xf32> to vector<32x64xf32>
    %265 = vector.shape_cast %264 : vector<32x64xf32> to vector<2x16x64xf32>
    %c96 = arith.constant 96 : index
    %c0_72 = arith.constant 0 : index
    %266 = vector.load %arg2[%c96, %c0_72] : memref<144x128xf32, #tpu.memory_space<vmem>>, vector<2x128xf32>
    %267 = vector.extract_strided_slice %266 {offsets = [0, 0], sizes = [1, 32], strides = [1, 1]} : vector<2x128xf32> to vector<1x32xf32>
    %268 = vector.shape_cast %267 : vector<1x32xf32> to vector<1x1x32xf32>
    %269 = vector.broadcast %268 : vector<1x1x32xf32> to vector<2x8x32xf32>
    %270 = arith.mulf %263, %269 : vector<2x8x32xf32>
    %271 = vector.extract_strided_slice %266 {offsets = [1, 0], sizes = [1, 32], strides = [1, 1]} : vector<2x128xf32> to vector<1x32xf32>
    %272 = vector.shape_cast %271 : vector<1x32xf32> to vector<1x1x32xf32>
    %273 = vector.broadcast %272 : vector<1x1x32xf32> to vector<2x8x32xf32>
    %274 = arith.mulf %263, %273 : vector<2x8x32xf32>
    %275 = tpu.concatenate %270, %274 in 1 : vector<2x8x32xf32>, vector<2x8x32xf32> -> vector<2x16x32xf32>
    "tpu.trace_start"() <{level = 10 : i32, message = "bvh,bkh->bvk"}> : () -> ()
    %cst_73 = arith.constant dense<0.000000e+00> : vector<2x16x16xf32>
    %276 = tpu.matmul %261, %275, %cst_73 {dimension_numbers = #tpu.dot_dimension_numbers<[2], [2], [1], [1], [0, 0, 0, 1, 1, 1], [0], [0]>} : vector<2x16x32xf32>, vector<2x16x32xf32>, vector<2x16x16xf32> -> vector<2x16x16xf32>
    "tpu.trace_stop"() : () -> ()
    %277 = vector.extract_strided_slice %276 {offsets = [0, 0, 0], sizes = [2, 16, 8], strides = [1, 1, 1]} : vector<2x16x16xf32> to vector<2x16x8xf32>
    %cst_74 = arith.constant dense<0xFF800000> : vector<2x16xf32>
    %278 = vector.multi_reduction <maximumf>, %277, %cst_74 [2] : vector<2x16x8xf32> to vector<2x16xf32>
    %279 = vector.shape_cast %278 : vector<2x16xf32> to vector<2x16x1xf32>
    %cst_75 = arith.constant dense<0xFF800000> : vector<2x1xf32>
    %280 = vector.multi_reduction <maximumf>, %279, %cst_75 [1] : vector<2x16x1xf32> to vector<2x1xf32>
    %281 = vector.shape_cast %280 : vector<2x1xf32> to vector<2x1x1xf32>
    %282 = vector.broadcast %281 : vector<2x1x1xf32> to vector<2x16x8xf32>
    %283 = arith.subf %277, %282 : vector<2x16x8xf32>
    %284 = math.exp %283 : vector<2x16x8xf32>
    %cst_76 = arith.constant dense<0.000000e+00> : vector<2x16xf32>
    %285 = vector.multi_reduction <add>, %284, %cst_76 [2] : vector<2x16x8xf32> to vector<2x16xf32>
    %286 = vector.shape_cast %285 : vector<2x16xf32> to vector<2x16x1xf32>
    %cst_77 = arith.constant dense<0.000000e+00> : vector<2x1xf32>
    %287 = vector.multi_reduction <add>, %286, %cst_77 [1] : vector<2x16x1xf32> to vector<2x1xf32>
    %288 = vector.shape_cast %287 : vector<2x1xf32> to vector<2x1x1xf32>
    %289 = vector.broadcast %288 : vector<2x1x1xf32> to vector<2x16x8xf32>
    %290 = arith.divf %284, %289 : vector<2x16x8xf32>
    %291 = vector.extract_strided_slice %276 {offsets = [0, 0, 8], sizes = [2, 16, 8], strides = [1, 1, 1]} : vector<2x16x16xf32> to vector<2x16x8xf32>
    %cst_78 = arith.constant dense<0xFF800000> : vector<2x16xf32>
    %292 = vector.multi_reduction <maximumf>, %291, %cst_78 [2] : vector<2x16x8xf32> to vector<2x16xf32>
    %293 = vector.shape_cast %292 : vector<2x16xf32> to vector<2x16x1xf32>
    %cst_79 = arith.constant dense<0xFF800000> : vector<2x1xf32>
    %294 = vector.multi_reduction <maximumf>, %293, %cst_79 [1] : vector<2x16x1xf32> to vector<2x1xf32>
    %295 = vector.shape_cast %294 : vector<2x1xf32> to vector<2x1x1xf32>
    %296 = vector.broadcast %295 : vector<2x1x1xf32> to vector<2x16x8xf32>
    %297 = arith.subf %291, %296 : vector<2x16x8xf32>
    %298 = math.exp %297 : vector<2x16x8xf32>
    %cst_80 = arith.constant dense<0.000000e+00> : vector<2x16xf32>
    %299 = vector.multi_reduction <add>, %298, %cst_80 [2] : vector<2x16x8xf32> to vector<2x16xf32>
    %300 = vector.shape_cast %299 : vector<2x16xf32> to vector<2x16x1xf32>
    %cst_81 = arith.constant dense<0.000000e+00> : vector<2x1xf32>
    %301 = vector.multi_reduction <add>, %300, %cst_81 [1] : vector<2x16x1xf32> to vector<2x1xf32>
    %302 = vector.shape_cast %301 : vector<2x1xf32> to vector<2x1x1xf32>
    %303 = vector.broadcast %302 : vector<2x1x1xf32> to vector<2x16x8xf32>
    %304 = arith.divf %298, %303 : vector<2x16x8xf32>
    %c104 = arith.constant 104 : index
    %c0_82 = arith.constant 0 : index
    %305 = vector.load %arg2[%c104, %c0_82] : memref<144x128xf32, #tpu.memory_space<vmem>>, vector<2x128xf32>
    %c112 = arith.constant 112 : index
    %c0_83 = arith.constant 0 : index
    %306 = vector.load %arg2[%c112, %c0_83] : memref<144x128xf32, #tpu.memory_space<vmem>>, vector<32x128xf32>
    %307 = vector.extract_strided_slice %306 {offsets = [0, 0], sizes = [32, 32], strides = [1, 1]} : vector<32x128xf32> to vector<32x32xf32>
    %308 = vector.extract_strided_slice %306 {offsets = [0, 32], sizes = [32, 32], strides = [1, 1]} : vector<32x128xf32> to vector<32x32xf32>
    %309 = vector.shape_cast %251 : vector<2x8x32xf32> to vector<16x32xf32>
    %cst_84 = arith.constant dense<0.000000e+00> : vector<16x32xf32>
    %310 = tpu.matmul %309, %307, %cst_84 {dimension_numbers = #tpu.dot_dimension_numbers<[1], [0], [0], [1], [0, 0, 1, 1], [], []>} : vector<16x32xf32>, vector<32x32xf32>, vector<16x32xf32> -> vector<16x32xf32>
    %cst_85 = arith.constant 0.000000e+00 : f32
    %311 = vector.broadcast %cst_85 : f32 to vector<16x32xf32>
    %312 = arith.maximumf %310, %311 : vector<16x32xf32>
    %313 = vector.shape_cast %312 : vector<16x32xf32> to vector<2x8x32xf32>
    "tpu.trace_start"() <{level = 10 : i32, message = "bvs,bsh->bvh"}> : () -> ()
    %cst_86 = arith.constant dense<0.000000e+00> : vector<2x16x32xf32>
    %314 = tpu.matmul %290, %313, %cst_86 {dimension_numbers = #tpu.dot_dimension_numbers<[2], [1], [1], [2], [0, 0, 0, 1, 1, 2], [0], [0]>} : vector<2x16x8xf32>, vector<2x8x32xf32>, vector<2x16x32xf32> -> vector<2x16x32xf32>
    "tpu.trace_stop"() : () -> ()
    %315 = vector.extract_strided_slice %265 {offsets = [0, 0, 0], sizes = [2, 16, 32], strides = [1, 1, 1]} : vector<2x16x64xf32> to vector<2x16x32xf32>
    %316 = arith.mulf %315, %314 : vector<2x16x32xf32>
    %cst_87 = arith.constant dense<0.000000e+00> : vector<2x32xf32>
    %317 = vector.multi_reduction <add>, %316, %cst_87 [1] : vector<2x16x32xf32> to vector<2x32xf32>
    %cst_88 = arith.constant dense<0.000000e+00> : vector<2x32xf32>
    %318 = tpu.matmul %317, %308, %cst_88 {dimension_numbers = #tpu.dot_dimension_numbers<[1], [0], [0], [1], [0, 0, 1, 1], [], []>} : vector<2x32xf32>, vector<32x32xf32>, vector<2x32xf32> -> vector<2x32xf32>
    %319 = vector.extract_strided_slice %305 {offsets = [0, 0], sizes = [1, 32], strides = [1, 1]} : vector<2x128xf32> to vector<1x32xf32>
    %320 = vector.broadcast %319 : vector<1x32xf32> to vector<2x32xf32>
    %321 = arith.addf %318, %320 : vector<2x32xf32>
    %cst_89 = arith.constant 0.000000e+00 : f32
    %322 = vector.broadcast %cst_89 : f32 to vector<2x32xf32>
    %323 = arith.maximumf %321, %322 : vector<2x32xf32>
    %324 = vector.shape_cast %323 : vector<2x32xf32> to vector<2x1x32xf32>
    %325 = vector.broadcast %324 : vector<2x1x32xf32> to vector<2x8x32xf32>
    %326 = arith.addf %251, %325 : vector<2x8x32xf32>
    %327 = vector.extract_strided_slice %306 {offsets = [0, 64], sizes = [32, 32], strides = [1, 1]} : vector<32x128xf32> to vector<32x32xf32>
    %328 = vector.extract_strided_slice %306 {offsets = [0, 96], sizes = [32, 32], strides = [1, 1]} : vector<32x128xf32> to vector<32x32xf32>
    %329 = vector.shape_cast %326 : vector<2x8x32xf32> to vector<16x32xf32>
    %cst_90 = arith.constant dense<0.000000e+00> : vector<16x32xf32>
    %330 = tpu.matmul %329, %327, %cst_90 {dimension_numbers = #tpu.dot_dimension_numbers<[1], [0], [0], [1], [0, 0, 1, 1], [], []>} : vector<16x32xf32>, vector<32x32xf32>, vector<16x32xf32> -> vector<16x32xf32>
    %cst_91 = arith.constant 0.000000e+00 : f32
    %331 = vector.broadcast %cst_91 : f32 to vector<16x32xf32>
    %332 = arith.maximumf %330, %331 : vector<16x32xf32>
    %333 = vector.shape_cast %332 : vector<16x32xf32> to vector<2x8x32xf32>
    "tpu.trace_start"() <{level = 10 : i32, message = "bvs,bsh->bvh"}> : () -> ()
    %cst_92 = arith.constant dense<0.000000e+00> : vector<2x16x32xf32>
    %334 = tpu.matmul %304, %333, %cst_92 {dimension_numbers = #tpu.dot_dimension_numbers<[2], [1], [1], [2], [0, 0, 0, 1, 1, 2], [0], [0]>} : vector<2x16x8xf32>, vector<2x8x32xf32>, vector<2x16x32xf32> -> vector<2x16x32xf32>
    "tpu.trace_stop"() : () -> ()
    %335 = vector.extract_strided_slice %265 {offsets = [0, 0, 32], sizes = [2, 16, 32], strides = [1, 1, 1]} : vector<2x16x64xf32> to vector<2x16x32xf32>
    %336 = arith.mulf %335, %334 : vector<2x16x32xf32>
    %cst_93 = arith.constant dense<0.000000e+00> : vector<2x32xf32>
    %337 = vector.multi_reduction <add>, %336, %cst_93 [1] : vector<2x16x32xf32> to vector<2x32xf32>
    %cst_94 = arith.constant dense<0.000000e+00> : vector<2x32xf32>
    %338 = tpu.matmul %337, %328, %cst_94 {dimension_numbers = #tpu.dot_dimension_numbers<[1], [0], [0], [1], [0, 0, 1, 1], [], []>} : vector<2x32xf32>, vector<32x32xf32>, vector<2x32xf32> -> vector<2x32xf32>
    %339 = vector.extract_strided_slice %305 {offsets = [1, 0], sizes = [1, 32], strides = [1, 1]} : vector<2x128xf32> to vector<1x32xf32>
    %340 = vector.broadcast %339 : vector<1x32xf32> to vector<2x32xf32>
    %341 = arith.addf %338, %340 : vector<2x32xf32>
    %cst_95 = arith.constant 0.000000e+00 : f32
    %342 = vector.broadcast %cst_95 : f32 to vector<2x32xf32>
    %343 = arith.maximumf %341, %342 : vector<2x32xf32>
    %344 = vector.shape_cast %343 : vector<2x32xf32> to vector<2x1x32xf32>
    %345 = vector.broadcast %344 : vector<2x1x32xf32> to vector<2x8x32xf32>
    %346 = arith.addf %326, %345 : vector<2x8x32xf32>
    %cst_96 = arith.constant dense<0.000000e+00> : vector<2x32xf32>
    %347 = vector.multi_reduction <add>, %346, %cst_96 [1] : vector<2x8x32xf32> to vector<2x32xf32>
    %c0_97 = arith.constant 0 : index
    %c0_98 = arith.constant 0 : index
    %348 = vector.load %arg3[%c0_97, %c0_98] : memref<2x32xf32, #tpu.memory_space<vmem>>, vector<2x32xf32>
    tpu.vector_store %arg3[%c0_97, %c0_98], %347 {strides = array<i32>} : memref<2x32xf32, #tpu.memory_space<vmem>>, vector<2x32xf32>,
    return
  }
}

</mosaic_0001>

<llo_original>
// kernel: ban_forward.1
$region0: #{ban_forward.1}
  #allocation0 [shape = 'u32[]', space=smem, size = 0x4, offset = 0x4, fixed_abs, tag = 'smem constant byte address 0x4 - core index']
  #allocation1 [shape = 'u32[72,128]{1,0:T(1,128)}', space=vmem, size = 0x9000, scoped, tag = 'internal scratch']
  %s0 = inlined_call_operand.hbm [shape: s32[2,8], index: 0, kind: input, shape index: {}]
  %s1 = inlined_call_operand.hbm [shape: f32[2,16,32], index: 1, kind: input, shape index: {}]
  %s2 = inlined_call_operand.hbm [shape: f32[144,128], index: 2, kind: input, shape index: {}]
  %s3 = inlined_call_operand.hbm [shape: f32[2,32], index: 3, kind: output, shape index: {}]
  %s4 = sld [smem:[#allocation0]]
  $region34: #{ban_forward.1} parent=0
    _
  %s6 = ssub.s32 1, %s4
  %s7 = scalar_select 0, %s6, %s4
  $region1: #{ban_forward.1} parent=0
    #allocation2 [shape = 'u8[1024]{0}', space=smem, size = 0x400, scoped, tag = 'input window, operand 0, single buffered']
    #allocation3 [shape = 's32[1]{0}', space=sflag, size = 0x4, scoped, tag = 'scoped memory for ban_forward.1']
    #allocation4 [shape = 's32[1]{0}', space=sflag, size = 0x4, scoped, tag = 'scoped memory for ban_forward.1']
    #allocation5 [shape = 's32[1]{0}', space=sflag, size = 0x4, scoped, tag = 'scoped memory for ban_forward.1']
    #allocation6 [shape = 'u8[16384]{0}', space=vmem, size = 0x4000, scoped, tag = 'input window, operand 1, single buffered']
    #allocation7 [shape = 'u8[73728]{0}', space=vmem, size = 0x12000, scoped, tag = 'input window, operand 2, single buffered']
    #allocation8 [shape = 's32[1]{0}', space=sflag, size = 0x4, scoped, tag = 'scoped memory for ban_forward.1']
    #allocation9 [shape = 'u8[1024]{0}', space=vmem, size = 0x400, scoped, tag = 'output window, operand 0, single buffered']
    %8 = vsyncpa [#allocation5], 0
    %9 = vsyncpa [#allocation3], 0
    %10 = vsyncpa [#allocation8], 0
    %11 = vsyncpa [#allocation4], 0
    // Predicated region
    $region2: #{ban_forward.1} parent=1 // pred_check
      _
    $region3: #{ban_forward.1} parent=1 // pred_check_branch
      %13 = sbr.rel (0) target = $region5
    $region4: #{ban_forward.1} parent=1 // pred_region
      %15 = vsyncadd [#allocation5], 0
      %s17 = sshll.u32 %s0, 4
      %s18 = int_to_ptr.hbm [resolvable:$true] %s17
      %20 = dma.hbm_to_smem %s18, 32, [#allocation2], [#allocation5]
    $region5: #{ban_forward.1} parent=1 // pred_fallthru
      _
    // Predicated region
    $region6: #{ban_forward.1} parent=1 // pred_check
      _
    $region7: #{ban_forward.1} parent=1 // pred_check_branch
      %22 = sbr.rel (0) target = $region9
    $region8: #{ban_forward.1} parent=1 // pred_region
      %24 = vsyncadd [#allocation3], 0
      %s25 = sshll.u32 %s1, 4
      %s26 = int_to_ptr.hbm [resolvable:$true] %s25
      %s27 = sshll.u32 [#allocation6], 4
      %s28 = int_to_ptr.vmem [resolvable:$true] %s27
      %33 = dma.hbm_to_vmem [thread:$0]  %s26, 512, %s28, [#allocation3], 128, 128, 8
    $region9: #{ban_forward.1} parent=1 // pred_fallthru
      _
    // Predicated region
    $region10: #{ban_forward.1} parent=1 // pred_check
      _
    $region11: #{ban_forward.1} parent=1 // pred_check_branch
      %35 = sbr.rel (0) target = $region13
    $region12: #{ban_forward.1} parent=1 // pred_region
      %37 = vsyncadd [#allocation8], 0
      %s38 = sshll.u32 %s2, 4
      %s39 = int_to_ptr.hbm [resolvable:$true] %s38
      %s40 = sshll.u32 [#allocation7], 4
      %s41 = int_to_ptr.vmem [resolvable:$true] %s40
      %46 = dma.hbm_to_vmem [thread:$0]  %s39, 2304, %s41, [#allocation8], 128, 128, 8
    $region13: #{ban_forward.1} parent=1 // pred_fallthru
      _
    // Predicated region
    $region14: #{ban_forward.1} parent=1 // pred_check
      _
    $region15: #{ban_forward.1} parent=1 // pred_check_branch
      %48 = sbr.rel (0) target = $region17
    $region16: #{ban_forward.1} parent=1 // pred_region
      %50 = dma.done [#allocation5], 32
    $region17: #{ban_forward.1} parent=1 // pred_fallthru
      _
    // Predicated region
    $region18: #{ban_forward.1} parent=1 // pred_check
      _
    $region19: #{ban_forward.1} parent=1 // pred_check_branch
      %52 = sbr.rel (0) target = $region21
    $region20: #{ban_forward.1} parent=1 // pred_region
      %54 = dma.done [#allocation3], 512
    $region21: #{ban_forward.1} parent=1 // pred_fallthru
      _
    // Predicated region
    $region22: #{ban_forward.1} parent=1 // pred_check
      _
    $region23: #{ban_forward.1} parent=1 // pred_check_branch
      %56 = sbr.rel (0) target = $region25
    $region24: #{ban_forward.1} parent=1 // pred_region
      %58 = dma.done [#allocation8], 2304
    $region25: #{ban_forward.1} parent=1 // pred_fallthru
      _
    %59 = sfence
    %v60 = vld [vmem:[#allocation7 + $0x18] sm:$0xff]
    %v61 = vld [vmem:[#allocation7 + $0x20] sm:$0xff]
    %v62 = vld [vmem:[#allocation7 + $0x28] sm:$0xff]
    %v63 = vld [vmem:[#allocation7 + $0x30] sm:$0xff]
    %v64 = vld [vmem:[#allocation7 + $0x38] sm:$0x1]
    %s65 = sld [smem:[#allocation2]]
    %s66 = scalar_lea.vmem [#allocation7], %s65
    %v67 = vld [vmem:[%s66] sm:$0x1]
    %s68 = sld [smem:[#allocation2 + $0x80]]
    %s69 = scalar_lea.vmem [#allocation7], %s68
    %v70 = vld [vmem:[%s69] sm:$0x1]
    %v72 = vrot.slane %v70, 7
    %vm74 = vcmask 1040384
    %v75 = vsel %vm74, %v67, %v72
    %v76 = vperm.slane %v64, 0
    %vm77 = vcmask 261120
    %v79 = vsel %vm77, 0.0, 0
    %81 = vmatpush.msra.mxu0 0.0
    %82 = vmatpush.msra.mxu0 0.0
    %83 = vmatpush.msra.mxu0 0.0
    %84 = vmatpush.msra.mxu0 0.0
    %85 = vmatpush.msra.mxu0 0.0
    %86 = vmatpush.msra.mxu0 0.0
    %87 = vmatpush.msra.mxu0 0.0
    %88 = vmatpush.msra.mxu0 0.0
    %89 = vmatpush.msra.mxu0 0.0
    %90 = vmatpush.msra.mxu0 0.0
    %91 = vmatpush.msra.mxu0 0.0
    %92 = vmatpush.msra.mxu0 0.0
    %93 = vmatpush.msra.mxu0 %v63
    %94 = vmatpush.msra.mxu0 %v62
    %95 = vmatpush.msra.mxu0 %v61
    %96 = vmatpush.msra.mxu0 %v60
    %97 = vmatmul.f32.gmra.mxu0 %v79
    %v98 = vpop.f32.mrf.mxu0
    %v99 = vadd.f32 %v76, %v98
    %100 = vdwg.mxu0
    %v101 = vadd.f32 %v75, %v99
    %v102 = vxor.u32 %v101, 2147483648
    %v103 = vmul.f32 %v102, 1.442695
    %v104 = vpow.pop %v103
    %v105 = vadd.f32 %v104, 1.0
    %v106 = vrcp.pop %v105
    %v107 = vmul.f32 %v105, %v106
    %v108 = vsub.f32 1.0, %v107
    %v109 = vmul.f32 %v106, %v108
    %v110 = vadd.f32 %v106, %v109
    %vm111 = vweird.f32 %v105
    %vm112 = vweird.f32 %v106
    %vm113 = vmor %vm111, %vm112
    %v114 = vsel %vm113, %v106, %v110
    %v115 = vand.u32 2147483647, %v105
    %vm116 = vcmp.eq.f32.partialorder %v115, 8.507059e+37
    %v117 = vand.u32 %v105, 2147483648
    %v118 = vor.u32 1.1754944e-38, %v117
    %v119 = vsel %vm116, %v118, %v114
    %v120 = vmul.f32 1.0, %v119
    %122 = vrot.lane.b32.xlu0 %v99, 64
    %v123 = vpop.permute.xlu0 %122
    %v125 = vmul.f32 %v120, %v123
    %127 = vrot.lane.b32.xlu0 %v125, 64
    %v128 = vpop.permute.xlu0 %127
    %v130 = vadd.f32 %v75, %v128
    %v131 = vtanh.pop %v130
    %v132 = vsub.f32 1.0, %v120
    %134 = vrot.lane.b32.xlu0 %v131, 96
    %v135 = vpop.permute.xlu0 %134
    %v137 = vmul.f32 %v132, %v135
    %v138 = vmul.f32 %v120, 0.0
    %v139 = vadd.f32 %v137, %v138
    %s140 = sld [smem:[#allocation2 + $0x1]]
    %s141 = scalar_lea.vmem [#allocation7], %s140
    %v142 = vld [vmem:[%s141] sm:$0x1]
    %s143 = sld [smem:[#allocation2 + $0x81]]
    %s144 = scalar_lea.vmem [#allocation7], %s143
    %v145 = vld [vmem:[%s144] sm:$0x1]
    %v147 = vrot.slane %v145, 7
    %v149 = vsel %vm74, %v142, %v147
    %151 = vrot.lane.b32.xlu0 %v139, 96
    %v152 = vpop.permute.xlu0 %151
    %v153 = vsel %vm77, %v152, 0
    %155 = vmatpush.msra.mxu0 0.0
    %156 = vmatpush.msra.mxu0 0.0
    %157 = vmatpush.msra.mxu0 0.0
    %158 = vmatpush.msra.mxu0 0.0
    %159 = vmatpush.msra.mxu0 0.0
    %160 = vmatpush.msra.mxu0 0.0
    %161 = vmatpush.msra.mxu0 0.0
    %162 = vmatpush.msra.mxu0 0.0
    %163 = vmatpush.msra.mxu0 0.0
    %164 = vmatpush.msra.mxu0 0.0
    %165 = vmatpush.msra.mxu0 0.0
    %166 = vmatpush.msra.mxu0 0.0
    %167 = vmatpush.msra.mxu0 %v63
    %168 = vmatpush.msra.mxu0 %v62
    %169 = vmatpush.msra.mxu0 %v61
    %170 = vmatpush.msra.mxu0 %v60
    %171 = vmatmul.f32.gmra.mxu0 %v153
    %v172 = vpop.f32.mrf.mxu0
    %v173 = vadd.f32 %v76, %v172
    %174 = vdwg.mxu0
    %v175 = vadd.f32 %v149, %v173
    %v176 = vxor.u32 %v175, 2147483648
    %v177 = vmul.f32 %v176, 1.442695
    %v178 = vpow.pop %v177
    %v179 = vadd.f32 %v178, 1.0
    %v180 = vrcp.pop %v179
    %v181 = vmul.f32 %v179, %v180
    %v182 = vsub.f32 1.0, %v181
    %v183 = vmul.f32 %v180, %v182
    %v184 = vadd.f32 %v180, %v183
    %vm185 = vweird.f32 %v179
    %vm186 = vweird.f32 %v180
    %vm187 = vmor %vm185, %vm186
    %v188 = vsel %vm187, %v180, %v184
    %v189 = vand.u32 2147483647, %v179
    %vm190 = vcmp.eq.f32.partialorder %v189, 8.507059e+37
    %v191 = vand.u32 %v179, 2147483648
    %v192 = vor.u32 1.1754944e-38, %v191
    %v193 = vsel %vm190, %v192, %v188
    %v194 = vmul.f32 1.0, %v193
    %196 = vrot.lane.b32.xlu0 %v173, 64
    %v197 = vpop.permute.xlu0 %196
    %v199 = vmul.f32 %v194, %v197
    %201 = vrot.lane.b32.xlu0 %v199, 64
    %v202 = vpop.permute.xlu0 %201
    %v204 = vadd.f32 %v149, %v202
    %v205 = vtanh.pop %v204
    %v206 = vsub.f32 1.0, %v194
    %208 = vrot.lane.b32.xlu0 %v205, 96
    %v209 = vpop.permute.xlu0 %208
    %v211 = vmul.f32 %v206, %v209
    %v212 = vmul.f32 %v194, %v139
    %v213 = vadd.f32 %v211, %v212
    %s214 = sld [smem:[#allocation2 + $0x2]]
    %s215 = scalar_lea.vmem [#allocation7], %s214
    %v216 = vld [vmem:[%s215] sm:$0x1]
    %s217 = sld [smem:[#allocation2 + $0x82]]
    %s218 = scalar_lea.vmem [#allocation7], %s217
    %v219 = vld [vmem:[%s218] sm:$0x1]
    %v221 = vrot.slane %v219, 7
    %v223 = vsel %vm74, %v216, %v221
    %225 = vrot.lane.b32.xlu0 %v213, 96
    %v226 = vpop.permute.xlu0 %225
    %v227 = vsel %vm77, %v226, 0
    %229 = vmatpush.msra.mxu0 0.0
    %230 = vmatpush.msra.mxu0 0.0
    %231 = vmatpush.msra.mxu0 0.0
    %232 = vmatpush.msra.mxu0 0.0
    %233 = vmatpush.msra.mxu0 0.0
    %234 = vmatpush.msra.mxu0 0.0
    %235 = vmatpush.msra.mxu0 0.0
    %236 = vmatpush.msra.mxu0 0.0
    %237 = vmatpush.msra.mxu0 0.0
    %238 = vmatpush.msra.mxu0 0.0
    %239 = vmatpush.msra.mxu0 0.0
    %240 = vmatpush.msra.mxu0 0.0
    %241 = vmatpush.msra.mxu0 %v63
    %242 = vmatpush.msra.mxu0 %v62
    %243 = vmatpush.msra.mxu0 %v61
    %244 = vmatpush.msra.mxu0 %v60
    %245 = vmatmul.f32.gmra.mxu0 %v227
    %v246 = vpop.f32.mrf.mxu0
    %v247 = vadd.f32 %v76, %v246
    %248 = vdwg.mxu0
    %v249 = vadd.f32 %v223, %v247
    %v250 = vxor.u32 %v249, 2147483648
    %v251 = vmul.f32 %v250, 1.442695
    %v252 = vpow.pop %v251
    %v253 = vadd.f32 %v252, 1.0
    %v254 = vrcp.pop %v253
    %v255 = vmul.f32 %v253, %v254
    %v256 = vsub.f32 1.0, %v255
    %v257 = vmul.f32 %v254, %v256
    %v258 = vadd.f32 %v254, %v257
    %vm259 = vweird.f32 %v253
    %vm260 = vweird.f32 %v254
    %vm261 = vmor %vm259, %vm260
    %v262 = vsel %vm261, %v254, %v258
    %v263 = vand.u32 2147483647, %v253
    %vm264 = vcmp.eq.f32.partialorder %v263, 8.507059e+37
    %v265 = vand.u32 %v253, 2147483648
    %v266 = vor.u32 1.1754944e-38, %v265
    %v267 = vsel %vm264, %v266, %v262
    %v268 = vmul.f32 1.0, %v267
    %270 = vrot.lane.b32.xlu0 %v247, 64
    %v271 = vpop.permute.xlu0 %270
    %v273 = vmul.f32 %v268, %v271
    %275 = vrot.lane.b32.xlu0 %v273, 64
    %v276 = vpop.permute.xlu0 %275
    %v278 = vadd.f32 %v223, %v276
    %v279 = vtanh.pop %v278
    %v280 = vsub.f32 1.0, %v268
    %282 = vrot.lane.b32.xlu0 %v279, 96
    %v283 = vpop.permute.xlu0 %282
    %v285 = vmul.f32 %v280, %v283
    %v286 = vmul.f32 %v268, %v213
    %v287 = vadd.f32 %v285, %v286
    %s288 = sld [smem:[#allocation2 + $0x3]]
    %s289 = scalar_lea.vmem [#allocation7], %s288
    %v290 = vld [vmem:[%s289] sm:$0x1]
    %s291 = sld [smem:[#allocation2 + $0x83]]
    %s292 = scalar_lea.vmem [#allocation7], %s291
    %v293 = vld [vmem:[%s292] sm:$0x1]
    %v295 = vrot.slane %v293, 7
    %v297 = vsel %vm74, %v290, %v295
    %299 = vrot.lane.b32.xlu0 %v287, 96
    %v300 = vpop.permute.xlu0 %299
    %v301 = vsel %vm77, %v300, 0
    %303 = vmatpush.msra.mxu0 0.0
    %304 = vmatpush.msra.mxu0 0.0
    %305 = vmatpush.msra.mxu0 0.0
    %306 = vmatpush.msra.mxu0 0.0
    %307 = vmatpush.msra.mxu0 0.0
    %308 = vmatpush.msra.mxu0 0.0
    %309 = vmatpush.msra.mxu0 0.0
    %310 = vmatpush.msra.mxu0 0.0
    %311 = vmatpush.msra.mxu0 0.0
    %312 = vmatpush.msra.mxu0 0.0
    %313 = vmatpush.msra.mxu0 0.0
    %314 = vmatpush.msra.mxu0 0.0
    %315 = vmatpush.msra.mxu0 %v63
    %316 = vmatpush.msra.mxu0 %v62
    %317 = vmatpush.msra.mxu0 %v61
    %318 = vmatpush.msra.mxu0 %v60
    %319 = vmatmul.f32.gmra.mxu0 %v301
    %v320 = vpop.f32.mrf.mxu0
    %v321 = vadd.f32 %v76, %v320
    %322 = vdwg.mxu0
    %v323 = vadd.f32 %v297, %v321
    %v324 = vxor.u32 %v323, 2147483648
    %v325 = vmul.f32 %v324, 1.442695
    %v326 = vpow.pop %v325
    %v327 = vadd.f32 %v326, 1.0
    %v328 = vrcp.pop %v327
    %v329 = vmul.f32 %v327, %v328
    %v330 = vsub.f32 1.0, %v329
    %v331 = vmul.f32 %v328, %v330
    %v332 = vadd.f32 %v328, %v331
    %vm333 = vweird.f32 %v327
    %vm334 = vweird.f32 %v328
    %vm335 = vmor %vm333, %vm334
    %v336 = vsel %vm335, %v328, %v332
    %v337 = vand.u32 2147483647, %v327
    %vm338 = vcmp.eq.f32.partialorder %v337, 8.507059e+37
    %v339 = vand.u32 %v327, 2147483648
    %v340 = vor.u32 1.1754944e-38, %v339
    %v341 = vsel %vm338, %v340, %v336
    %v342 = vmul.f32 1.0, %v341
    %344 = vrot.lane.b32.xlu0 %v321, 64
    %v345 = vpop.permute.xlu0 %344
    %v347 = vmul.f32 %v342, %v345
    %349 = vrot.lane.b32.xlu0 %v347, 64
    %v350 = vpop.permute.xlu0 %349
    %v352 = vadd.f32 %v297, %v350
    %v353 = vtanh.pop %v352
    %v354 = vsub.f32 1.0, %v342
    %356 = vrot.lane.b32.xlu0 %v353, 96
    %v357 = vpop.permute.xlu0 %356
    %v359 = vmul.f32 %v354, %v357
    %v360 = vmul.f32 %v342, %v287
    %v361 = vadd.f32 %v359, %v360
    %s362 = sld [smem:[#allocation2 + $0x4]]
    %s363 = scalar_lea.vmem [#allocation7], %s362
    %v364 = vld [vmem:[%s363] sm:$0x1]
    %s365 = sld [smem:[#allocation2 + $0x84]]
    %s366 = scalar_lea.vmem [#allocation7], %s365
    %v367 = vld [vmem:[%s366] sm:$0x1]
    %v369 = vrot.slane %v367, 7
    %v371 = vsel %vm74, %v364, %v369
    %373 = vrot.lane.b32.xlu0 %v361, 96
    %v374 = vpop.permute.xlu0 %373
    %v375 = vsel %vm77, %v374, 0
    %377 = vmatpush.msra.mxu0 0.0
    %378 = vmatpush.msra.mxu0 0.0
    %379 = vmatpush.msra.mxu0 0.0
    %380 = vmatpush.msra.mxu0 0.0
    %381 = vmatpush.msra.mxu0 0.0
    %382 = vmatpush.msra.mxu0 0.0
    %383 = vmatpush.msra.mxu0 0.0
    %384 = vmatpush.msra.mxu0 0.0
    %385 = vmatpush.msra.mxu0 0.0
    %386 = vmatpush.msra.mxu0 0.0
    %387 = vmatpush.msra.mxu0 0.0
    %388 = vmatpush.msra.mxu0 0.0
    %389 = vmatpush.msra.mxu0 %v63
    %390 = vmatpush.msra.mxu0 %v62
    %391 = vmatpush.msra.mxu0 %v61
    %392 = vmatpush.msra.mxu0 %v60
    %393 = vmatmul.f32.gmra.mxu0 %v375
    %v394 = vpop.f32.mrf.mxu0
    %v395 = vadd.f32 %v76, %v394
    %396 = vdwg.mxu0
    %v397 = vadd.f32 %v371, %v395
    %v398 = vxor.u32 %v397, 2147483648
    %v399 = vmul.f32 %v398, 1.442695
    %v400 = vpow.pop %v399
    %v401 = vadd.f32 %v400, 1.0
    %v402 = vrcp.pop %v401
    %v403 = vmul.f32 %v401, %v402
    %v404 = vsub.f32 1.0, %v403
    %v405 = vmul.f32 %v402, %v404
    %v406 = vadd.f32 %v402, %v405
    %vm407 = vweird.f32 %v401
    %vm408 = vweird.f32 %v402
    %vm409 = vmor %vm407, %vm408
    %v410 = vsel %vm409, %v402, %v406
    %v411 = vand.u32 2147483647, %v401
    %vm412 = vcmp.eq.f32.partialorder %v411, 8.507059e+37
    %v413 = vand.u32 %v401, 2147483648
    %v414 = vor.u32 1.1754944e-38, %v413
    %v415 = vsel %vm412, %v414, %v410
    %v416 = vmul.f32 1.0, %v415
    %418 = vrot.lane.b32.xlu0 %v395, 64
    %v419 = vpop.permute.xlu0 %418
    %v421 = vmul.f32 %v416, %v419
    %423 = vrot.lane.b32.xlu0 %v421, 64
    %v424 = vpop.permute.xlu0 %423
    %v426 = vadd.f32 %v371, %v424
    %v427 = vtanh.pop %v426
    %v428 = vsub.f32 1.0, %v416
    %430 = vrot.lane.b32.xlu0 %v427, 96
    %v431 = vpop.permute.xlu0 %430
    %v433 = vmul.f32 %v428, %v431
    %v434 = vmul.f32 %v416, %v361
    %v435 = vadd.f32 %v433, %v434
    %s436 = sld [smem:[#allocation2 + $0x5]]
    %s437 = scalar_lea.vmem [#allocation7], %s436
    %v438 = vld [vmem:[%s437] sm:$0x1]
    %s439 = sld [smem:[#allocation2 + $0x85]]
    %s440 = scalar_lea.vmem [#allocation7], %s439
    %v441 = vld [vmem:[%s440] sm:$0x1]
    %v443 = vrot.slane %v441, 7
    %v445 = vsel %vm74, %v438, %v443
    %447 = vrot.lane.b32.xlu0 %v435, 96
    %v448 = vpop.permute.xlu0 %447
    %v449 = vsel %vm77, %v448, 0
    %451 = vmatpush.msra.mxu0 0.0
    %452 = vmatpush.msra.mxu0 0.0
    %453 = vmatpush.msra.mxu0 0.0
    %454 = vmatpush.msra.mxu0 0.0
    %455 = vmatpush.msra.mxu0 0.0
    %456 = vmatpush.msra.mxu0 0.0
    %457 = vmatpush.msra.mxu0 0.0
    %458 = vmatpush.msra.mxu0 0.0
    %459 = vmatpush.msra.mxu0 0.0
    %460 = vmatpush.msra.mxu0 0.0
    %461 = vmatpush.msra.mxu0 0.0
    %462 = vmatpush.msra.mxu0 0.0
    %463 = vmatpush.msra.mxu0 %v63
    %464 = vmatpush.msra.mxu0 %v62
    %465 = vmatpush.msra.mxu0 %v61
    %466 = vmatpush.msra.mxu0 %v60
    %467 = vmatmul.f32.gmra.mxu0 %v449
    %v468 = vpop.f32.mrf.mxu0
    %v469 = vadd.f32 %v76, %v468
    %470 = vdwg.mxu0
    %v471 = vadd.f32 %v445, %v469
    %v472 = vxor.u32 %v471, 2147483648
    %v473 = vmul.f32 %v472, 1.442695
    %v474 = vpow.pop %v473
    %v475 = vadd.f32 %v474, 1.0
    %v476 = vrcp.pop %v475
    %v477 = vmul.f32 %v475, %v476
    %v478 = vsub.f32 1.0, %v477
    %v479 = vmul.f32 %v476, %v478
    %v480 = vadd.f32 %v476, %v479
    %vm481 = vweird.f32 %v475
    %vm482 = vweird.f32 %v476
    %vm483 = vmor %vm481, %vm482
    %v484 = vsel %vm483, %v476, %v480
    %v485 = vand.u32 2147483647, %v475
    %vm486 = vcmp.eq.f32.partialorder %v485, 8.507059e+37
    %v487 = vand.u32 %v475, 2147483648
    %v488 = vor.u32 1.1754944e-38, %v487
    %v489 = vsel %vm486, %v488, %v484
    %v490 = vmul.f32 1.0, %v489
    %492 = vrot.lane.b32.xlu0 %v469, 64
    %v493 = vpop.permute.xlu0 %492
    %v495 = vmul.f32 %v490, %v493
    %497 = vrot.lane.b32.xlu0 %v495, 64
    %v498 = vpop.permute.xlu0 %497
    %v500 = vadd.f32 %v445, %v498
    %v501 = vtanh.pop %v500
    %v502 = vsub.f32 1.0, %v490
    %504 = vrot.lane.b32.xlu0 %v501, 96
    %v505 = vpop.permute.xlu0 %504
    %v507 = vmul.f32 %v502, %v505
    %v508 = vmul.f32 %v490, %v435
    %v509 = vadd.f32 %v507, %v508
    %s510 = sld [smem:[#allocation2 + $0x6]]
    %s511 = scalar_lea.vmem [#allocation7], %s510
    %v512 = vld [vmem:[%s511] sm:$0x1]
    %s513 = sld [smem:[#allocation2 + $0x86]]
    %s514 = scalar_lea.vmem [#allocation7], %s513
    %v515 = vld [vmem:[%s514] sm:$0x1]
    %v517 = vrot.slane %v515, 7
    %v519 = vsel %vm74, %v512, %v517
    %521 = vrot.lane.b32.xlu0 %v509, 96
    %v522 = vpop.permute.xlu0 %521
    %v523 = vsel %vm77, %v522, 0
    %525 = vmatpush.msra.mxu0 0.0
    %526 = vmatpush.msra.mxu0 0.0
    %527 = vmatpush.msra.mxu0 0.0
    %528 = vmatpush.msra.mxu0 0.0
    %529 = vmatpush.msra.mxu0 0.0
    %530 = vmatpush.msra.mxu0 0.0
    %531 = vmatpush.msra.mxu0 0.0
    %532 = vmatpush.msra.mxu0 0.0
    %533 = vmatpush.msra.mxu0 0.0
    %534 = vmatpush.msra.mxu0 0.0
    %535 = vmatpush.msra.mxu0 0.0
    %536 = vmatpush.msra.mxu0 0.0
    %537 = vmatpush.msra.mxu0 %v63
    %538 = vmatpush.msra.mxu0 %v62
    %539 = vmatpush.msra.mxu0 %v61
    %540 = vmatpush.msra.mxu0 %v60
    %541 = vmatmul.f32.gmra.mxu0 %v523
    %v542 = vpop.f32.mrf.mxu0
    %v543 = vadd.f32 %v76, %v542
    %544 = vdwg.mxu0
    %v545 = vadd.f32 %v519, %v543
    %v546 = vxor.u32 %v545, 2147483648
    %v547 = vmul.f32 %v546, 1.442695
    %v548 = vpow.pop %v547
    %v549 = vadd.f32 %v548, 1.0
    %v550 = vrcp.pop %v549
    %v551 = vmul.f32 %v549, %v550
    %v552 = vsub.f32 1.0, %v551
    %v553 = vmul.f32 %v550, %v552
    %v554 = vadd.f32 %v550, %v553
    %vm555 = vweird.f32 %v549
    %vm556 = vweird.f32 %v550
    %vm557 = vmor %vm555, %vm556
    %v558 = vsel %vm557, %v550, %v554
    %v559 = vand.u32 2147483647, %v549
    %vm560 = vcmp.eq.f32.partialorder %v559, 8.507059e+37
    %v561 = vand.u32 %v549, 2147483648
    %v562 = vor.u32 1.1754944e-38, %v561
    %v563 = vsel %vm560, %v562, %v558
    %v564 = vmul.f32 1.0, %v563
    %566 = vrot.lane.b32.xlu0 %v543, 64
    %v567 = vpop.permute.xlu0 %566
    %v569 = vmul.f32 %v564, %v567
    %571 = vrot.lane.b32.xlu0 %v569, 64
    %v572 = vpop.permute.xlu0 %571
    %v574 = vadd.f32 %v519, %v572
    %v575 = vtanh.pop %v574
    %v576 = vsub.f32 1.0, %v564
    %578 = vrot.lane.b32.xlu0 %v575, 96
    %v579 = vpop.permute.xlu0 %578
    %v581 = vmul.f32 %v576, %v579
    %v582 = vmul.f32 %v564, %v509
    %v583 = vadd.f32 %v581, %v582
    %s584 = sld [smem:[#allocation2 + $0x7]]
    %s585 = scalar_lea.vmem [#allocation7], %s584
    %v586 = vld [vmem:[%s585] sm:$0x1]
    %s587 = sld [smem:[#allocation2 + $0x87]]
    %s588 = scalar_lea.vmem [#allocation7], %s587
    %v589 = vld [vmem:[%s588] sm:$0x1]
    %v591 = vrot.slane %v589, 7
    %v593 = vsel %vm74, %v586, %v591
    %595 = vrot.lane.b32.xlu0 %v583, 96
    %v596 = vpop.permute.xlu0 %595
    %v597 = vsel %vm77, %v596, 0
    %599 = vmatpush.msra.mxu0 0.0
    %600 = vmatpush.msra.mxu0 0.0
    %601 = vmatpush.msra.mxu0 0.0
    %602 = vmatpush.msra.mxu0 0.0
    %603 = vmatpush.msra.mxu0 0.0
    %604 = vmatpush.msra.mxu0 0.0
    %605 = vmatpush.msra.mxu0 0.0
    %606 = vmatpush.msra.mxu0 0.0
    %607 = vmatpush.msra.mxu0 0.0
    %608 = vmatpush.msra.mxu0 0.0
    %609 = vmatpush.msra.mxu0 0.0
    %610 = vmatpush.msra.mxu0 0.0
    %611 = vmatpush.msra.mxu0 %v63
    %612 = vmatpush.msra.mxu0 %v62
    %613 = vmatpush.msra.mxu0 %v61
    %614 = vmatpush.msra.mxu0 %v60
    %615 = vmatmul.f32.gmra.mxu0 %v597
    %v616 = vpop.f32.mrf.mxu0
    %v617 = vadd.f32 %v76, %v616
    %618 = vdwg.mxu0
    %v619 = vadd.f32 %v593, %v617
    %v620 = vxor.u32 %v619, 2147483648
    %v621 = vmul.f32 %v620, 1.442695
    %v622 = vpow.pop %v621
    %v623 = vadd.f32 %v622, 1.0
    %v624 = vrcp.pop %v623
    %v625 = vmul.f32 %v623, %v624
    %v626 = vsub.f32 1.0, %v625
    %v627 = vmul.f32 %v624, %v626
    %v628 = vadd.f32 %v624, %v627
    %vm629 = vweird.f32 %v623
    %vm630 = vweird.f32 %v624
    %vm631 = vmor %vm629, %vm630
    %v632 = vsel %vm631, %v624, %v628
    %v633 = vand.u32 2147483647, %v623
    %vm634 = vcmp.eq.f32.partialorder %v633, 8.507059e+37
    %v635 = vand.u32 %v623, 2147483648
    %v636 = vor.u32 1.1754944e-38, %v635
    %v637 = vsel %vm634, %v636, %v632
    %v638 = vmul.f32 1.0, %v637
    %640 = vrot.lane.b32.xlu0 %v617, 64
    %v641 = vpop.permute.xlu0 %640
    %v643 = vmul.f32 %v638, %v641
    %645 = vrot.lane.b32.xlu0 %v643, 64
    %v646 = vpop.permute.xlu0 %645
    %v648 = vadd.f32 %v593, %v646
    %v649 = vtanh.pop %v648
    %v650 = vsub.f32 1.0, %v638
    %652 = vrot.lane.b32.xlu0 %v649, 96
    %v653 = vpop.permute.xlu0 %652
    %v655 = vmul.f32 %v650, %v653
    %v656 = vmul.f32 %v638, %v583
    %v657 = vadd.f32 %v655, %v656
    %v658 = vrot.slane %v139, 1
    %v660 = vrot.slane %v213, 1
    %v661 = vrot.slane %v287, 1
    %v662 = vrot.slane %v361, 1
    %v663 = vrot.slane %v435, 1
    %v664 = vrot.slane %v509, 1
    %v665 = vrot.slane %v583, 1
    %v667 = vrot.slane %v657, 1
    %v668 = vperm.slane %v213, 0
    %v669 = vperm.slane %v660, 0
    %v672 = vperm.slane %v287, 0
    %v673 = vperm.slane %v661, 0
    %v676 = vperm.slane %v361, 0
    %v677 = vperm.slane %v662, 0
    %v680 = vperm.slane %v435, 0
    %v681 = vperm.slane %v663, 0
    %v684 = vperm.slane %v509, 0
    %v685 = vperm.slane %v664, 0
    %v688 = vperm.slane %v583, 0
    %v689 = vperm.slane %v665, 0
    %v692 = vperm.slane %v657, 0
    %v693 = vperm.slane %v667, 0
    %v696 = vsel %vm74, %v139, %v668
    %v697 = vsel %vm74, %v658, %v669
    %vm698 = vcmask 1041408
    %v699 = vsel %vm698, %v696, %v672
    %v700 = vsel %vm698, %v697, %v673
    %vm701 = vcmask 1042432
    %v702 = vsel %vm701, %v699, %v676
    %v703 = vsel %vm701, %v700, %v677
    %vm704 = vcmask 1043456
    %v705 = vsel %vm704, %v702, %v680
    %v706 = vsel %vm704, %v703, %v681
    %vm707 = vcmask 1044480
    %v708 = vsel %vm707, %v705, %v684
    %v709 = vsel %vm707, %v706, %v685
    %vm710 = vcmask 1045504
    %v711 = vsel %vm710, %v708, %v688
    %v712 = vsel %vm710, %v709, %v689
    %vm713 = vcmask 1046528
    %v714 = vsel %vm713, %v711, %v692
    %v715 = vsel %vm713, %v712, %v693
    %v716 = vld [vmem:[#allocation7 + $0x40] sm:$0xff]
    %v717 = vld [vmem:[#allocation7 + $0x48] sm:$0xff]
    %v718 = vld [vmem:[#allocation7 + $0x50] sm:$0xff]
    %v719 = vld [vmem:[#allocation7 + $0x58] sm:$0xff]
    %v720 = vld [vmem:[#allocation6] sm:$0xff]
    %v721 = vld [vmem:[#allocation6 + $0x8] sm:$0xff]
    %v722 = vld [vmem:[#allocation6 + $0x10] sm:$0xff]
    %v723 = vld [vmem:[#allocation6 + $0x18] sm:$0xff]
    %726 = vrot.lane.b32.xlu0 %v714, 96
    %v727 = vpop.permute.xlu0 %726
    %728 = vrot.lane.b32.xlu0 %v715, 96
    %v729 = vpop.permute.xlu0 %728
    %v731 = vsel %vm77, %v720, 0
    %v734 = vsel %vm77, %v721, 0
    %v737 = vsel %vm77, %v722, 0
    %v740 = vsel %vm77, %v723, 0
    %v742 = vsel %vm77, %v727, 0
    %v744 = vsel %vm77, %v729, 0
    %746 = vmatpush.msra.mxu0 0.0
    %747 = vmatpush.msra.mxu0 0.0
    %748 = vmatpush.msra.mxu0 0.0
    %749 = vmatpush.msra.mxu0 0.0
    %750 = vmatpush.msra.mxu0 0.0
    %751 = vmatpush.msra.mxu0 0.0
    %752 = vmatpush.msra.mxu0 0.0
    %753 = vmatpush.msra.mxu0 0.0
    %754 = vmatpush.msra.mxu0 0.0
    %755 = vmatpush.msra.mxu0 0.0
    %756 = vmatpush.msra.mxu0 0.0
    %757 = vmatpush.msra.mxu0 0.0
    %758 = vmatpush.msra.mxu0 %v719
    %759 = vmatpush.msra.mxu0 %v718
    %760 = vmatpush.msra.mxu0 %v717
    %761 = vmatpush.msra.mxu0 %v716
    %762 = vmatmul.f32.gmra.mxu0 %v731
    %v763 = vpop.f32.mrf.mxu0
    %v764 = vadd.f32 0.0, %v763
    %765 = vmatmul.f32.gmra.mxu0 %v734
    %v766 = vpop.f32.mrf.mxu0
    %v767 = vadd.f32 0.0, %v766
    %768 = vmatmul.f32.gmra.mxu0 %v737
    %v769 = vpop.f32.mrf.mxu0
    %v770 = vadd.f32 0.0, %v769
    %771 = vmatmul.f32.gmra.mxu0 %v740
    %v772 = vpop.f32.mrf.mxu0
    %v773 = vadd.f32 0.0, %v772
    %774 = vmatmul.f32.gmra.mxu0 %v742
    %v775 = vpop.f32.mrf.mxu0
    %v776 = vadd.f32 0.0, %v775
    %777 = vmatmul.f32.gmra.mxu0 %v744
    %v778 = vpop.f32.mrf.mxu0
    %v779 = vadd.f32 0.0, %v778
    %780 = vdwg.mxu0
    %v781 = vmax.f32 %v764, 0.0
    %v782 = vmax.f32 %v767, 0.0
    %v783 = vmax.f32 %v770, 0.0
    %v784 = vmax.f32 %v773, 0.0
    %v785 = vmax.f32 %v776, 0.0
    %v786 = vmax.f32 %v779, 0.0
    %v787 = vld [vmem:[#allocation7 + $0x60] sm:$0x3]
    %v788 = vperm.slane %v787, 0
    %790 = vrot.lane.b32.xlu0 %v788, 32
    %v791 = vpop.permute.xlu0 %790
    %v793 = vmul.f32 %v785, %v791
    %v794 = vmul.f32 %v786, %v791
    %v795 = vperm.slane %v787, 1
    %797 = vrot.lane.b32.xlu0 %v795, 32
    %v798 = vpop.permute.xlu0 %797
    %v800 = vmul.f32 %v785, %v798
    %v801 = vmul.f32 %v786, %v798
    %804 = vrot.lane.b32.xlu0 %v793, 96
    %v805 = vpop.permute.xlu0 %804
    %806 = vrot.lane.b32.xlu0 %v800, 96
    %v807 = vpop.permute.xlu0 %806
    %v809 = vsel %vm77, %v781, 0
    %v812 = vsel %vm77, %v782, 0
    %v814 = vsel %vm77, %v805, 0
    %v816 = vsel %vm77, %v807, 0
    %818 = vmatpush.xpose.msra.mxu0 0.0
    %819 = vmatpush.xpose.msra.mxu0 0.0
    %820 = vmatpush.xpose.msra.mxu0 0.0
    %821 = vmatpush.xpose.msra.mxu0 0.0
    %822 = vmatpush.xpose.msra.mxu0 0.0
    %823 = vmatpush.xpose.msra.mxu0 0.0
    %824 = vmatpush.xpose.msra.mxu0 0.0
    %825 = vmatpush.xpose.msra.mxu0 0.0
    %826 = vmatpush.xpose.msra.mxu0 0.0
    %827 = vmatpush.xpose.msra.mxu0 0.0
    %828 = vmatpush.xpose.msra.mxu0 0.0
    %829 = vmatpush.xpose.msra.mxu0 0.0
    %830 = vmatpush.xpose.msra.mxu0 0.0
    %831 = vmatpush.xpose.msra.mxu0 0.0
    %832 = vmatpush.xpose.msra.mxu0 %v816
    %833 = vmatpush.xpose.msra.mxu0 %v814
    %834 = vmatmul.f32.gmra.mxu0 %v809
    %v835 = vpop.f32.mrf.mxu0
    %v836 = vadd.f32 0.0, %v835
    %837 = vmatmul.f32.gmra.mxu0 %v812
    %v838 = vpop.f32.mrf.mxu0
    %v839 = vadd.f32 0.0, %v838
    %840 = vdwg.mxu0
    %843 = vrot.lane.b32.xlu0 %v794, 96
    %v844 = vpop.permute.xlu0 %843
    %845 = vrot.lane.b32.xlu0 %v801, 96
    %v846 = vpop.permute.xlu0 %845
    %v848 = vsel %vm77, %v783, 0
    %v851 = vsel %vm77, %v784, 0
    %v853 = vsel %vm77, %v844, 0
    %v855 = vsel %vm77, %v846, 0
    %857 = vmatpush.xpose.msra.mxu0 0.0
    %858 = vmatpush.xpose.msra.mxu0 0.0
    %859 = vmatpush.xpose.msra.mxu0 0.0
    %860 = vmatpush.xpose.msra.mxu0 0.0
    %861 = vmatpush.xpose.msra.mxu0 0.0
    %862 = vmatpush.xpose.msra.mxu0 0.0
    %863 = vmatpush.xpose.msra.mxu0 0.0
    %864 = vmatpush.xpose.msra.mxu0 0.0
    %865 = vmatpush.xpose.msra.mxu0 0.0
    %866 = vmatpush.xpose.msra.mxu0 0.0
    %867 = vmatpush.xpose.msra.mxu0 0.0
    %868 = vmatpush.xpose.msra.mxu0 0.0
    %869 = vmatpush.xpose.msra.mxu0 0.0
    %870 = vmatpush.xpose.msra.mxu0 0.0
    %871 = vmatpush.xpose.msra.mxu0 %v855
    %872 = vmatpush.xpose.msra.mxu0 %v853
    %873 = vmatmul.f32.gmra.mxu0 %v848
    %v874 = vpop.f32.mrf.mxu0
    %v875 = vadd.f32 0.0, %v874
    %876 = vmatmul.f32.gmra.mxu0 %v851
    %v877 = vpop.f32.mrf.mxu0
    %v878 = vadd.f32 0.0, %v877
    %879 = vdwg.mxu0
    %vm880 = vcmask 64512
    %v881 = vsel %vm880, %v836, -inf
    %882 = vmax.xlane.f32.xlu0 %v881
    %v883 = vpop.xlane.xlu0 %882
    %v884 = vsel %vm880, %v839, -inf
    %885 = vmax.xlane.f32.xlu0 %v884
    %v886 = vpop.xlane.xlu0 %885
    %v887 = vsel %vm880, %v875, -inf
    %888 = vmax.xlane.f32.xlu0 %v887
    %v889 = vpop.xlane.xlu0 %888
    %v890 = vsel %vm880, %v878, -inf
    %891 = vmax.xlane.f32.xlu0 %v890
    %v892 = vpop.xlane.xlu0 %891
    %v893 = vmax.f32 %v883, %v886
    %v894 = vrot.slane %v893, 4
    %v895 = vmax.f32 %v893, %v894
    %v896 = vrot.slane %v895, 2
    %v897 = vmax.f32 %v895, %v896
    %v898 = vrot.slane %v897, 1
    %v899 = vmax.f32 %v897, %v898
    %v900 = vmax.f32 %v889, %v892
    %v901 = vrot.slane %v900, 4
    %v902 = vmax.f32 %v900, %v901
    %v903 = vrot.slane %v902, 2
    %v904 = vmax.f32 %v902, %v903
    %v905 = vrot.slane %v904, 1
    %v906 = vmax.f32 %v904, %v905
    %v907 = vsub.f32 %v836, %v899
    %v908 = vsub.f32 %v839, %v899
    %v909 = vsub.f32 %v875, %v906
    %v910 = vsub.f32 %v878, %v906
    %v911 = vmul.f32 %v907, 1.442695
    %v912 = vpow.pop %v911
    %v913 = vmul.f32 %v908, 1.442695
    %v914 = vpow.pop %v913
    %v915 = vmul.f32 %v909, 1.442695
    %v916 = vpow.pop %v915
    %v917 = vmul.f32 %v910, 1.442695
    %v918 = vpow.pop %v917
    %v919 = vsel %vm880, %v912, 0.0
    %920 = vadd.xlane.f32.xlu0 %v919
    %v921 = vpop.xlane.xlu0 %920
    %v922 = vsel %vm880, %v914, 0.0
    %923 = vadd.xlane.f32.xlu0 %v922
    %v924 = vpop.xlane.xlu0 %923
    %v925 = vsel %vm880, %v916, 0.0
    %926 = vadd.xlane.f32.xlu0 %v925
    %v927 = vpop.xlane.xlu0 %926
    %v928 = vsel %vm880, %v918, 0.0
    %929 = vadd.xlane.f32.xlu0 %v928
    %v930 = vpop.xlane.xlu0 %929
    %v931 = vadd.f32 %v921, %v924
    %v932 = vrot.slane %v931, 4
    %v933 = vadd.f32 %v931, %v932
    %v934 = vrot.slane %v933, 2
    %v935 = vadd.f32 %v933, %v934
    %v936 = vrot.slane %v935, 1
    %v937 = vadd.f32 %v935, %v936
    %v938 = vadd.f32 %v927, %v930
    %v939 = vrot.slane %v938, 4
    %v940 = vadd.f32 %v938, %v939
    %v941 = vrot.slane %v940, 2
    %v942 = vadd.f32 %v940, %v941
    %v943 = vrot.slane %v942, 1
    %v944 = vadd.f32 %v942, %v943
    %v945 = vrcp.pop %v937
    %v946 = vmul.f32 %v937, %v945
    %v947 = vsub.f32 1.0, %v946
    %v948 = vmul.f32 %v945, %v947
    %v949 = vadd.f32 %v945, %v948
    %vm950 = vweird.f32 %v937
    %vm951 = vweird.f32 %v945
    %vm952 = vmor %vm950, %vm951
    %v953 = vsel %vm952, %v945, %v949
    %v954 = vand.u32 2147483647, %v937
    %vm955 = vcmp.eq.f32.partialorder %v954, 8.507059e+37
    %v956 = vand.u32 %v937, 2147483648
    %v957 = vor.u32 1.1754944e-38, %v956
    %v958 = vsel %vm955, %v957, %v953
    %v959 = vmul.f32 %v912, %v958
    %v960 = vmul.f32 %v914, %v958
    %v961 = vrcp.pop %v944
    %v962 = vmul.f32 %v944, %v961
    %v963 = vsub.f32 1.0, %v962
    %v964 = vmul.f32 %v961, %v963
    %v965 = vadd.f32 %v961, %v964
    %vm966 = vweird.f32 %v944
    %vm967 = vweird.f32 %v961
    %vm968 = vmor %vm966, %vm967
    %v969 = vsel %vm968, %v961, %v965
    %v970 = vand.u32 2147483647, %v944
    %vm971 = vcmp.eq.f32.partialorder %v970, 8.507059e+37
    %v972 = vand.u32 %v944, 2147483648
    %v973 = vor.u32 1.1754944e-38, %v972
    %v974 = vsel %vm971, %v973, %v969
    %v975 = vmul.f32 %v916, %v974
    %v976 = vmul.f32 %v918, %v974
    %vm977 = vcmask 130112
    %v978 = vsel %vm977, %v836, -inf
    %979 = vmax.xlane.f32.xlu0 %v978
    %v980 = vpop.xlane.xlu0 %979
    %v981 = vsel %vm977, %v839, -inf
    %982 = vmax.xlane.f32.xlu0 %v981
    %v983 = vpop.xlane.xlu0 %982
    %v984 = vsel %vm977, %v875, -inf
    %985 = vmax.xlane.f32.xlu0 %v984
    %v986 = vpop.xlane.xlu0 %985
    %v987 = vsel %vm977, %v878, -inf
    %988 = vmax.xlane.f32.xlu0 %v987
    %v989 = vpop.xlane.xlu0 %988
    %v990 = vmax.f32 %v980, %v983
    %v991 = vrot.slane %v990, 4
    %v992 = vmax.f32 %v990, %v991
    %v993 = vrot.slane %v992, 2
    %v994 = vmax.f32 %v992, %v993
    %v995 = vrot.slane %v994, 1
    %v996 = vmax.f32 %v994, %v995
    %v997 = vmax.f32 %v986, %v989
    %v998 = vrot.slane %v997, 4
    %v999 = vmax.f32 %v997, %v998
    %v1000 = vrot.slane %v999, 2
    %v1001 = vmax.f32 %v999, %v1000
    %v1002 = vrot.slane %v1001, 1
    %v1003 = vmax.f32 %v1001, %v1002
    %v1004 = vsub.f32 %v836, %v996
    %v1005 = vsub.f32 %v839, %v996
    %v1006 = vsub.f32 %v875, %v1003
    %v1007 = vsub.f32 %v878, %v1003
    %v1008 = vmul.f32 %v1004, 1.442695
    %v1009 = vpow.pop %v1008
    %v1010 = vmul.f32 %v1005, 1.442695
    %v1011 = vpow.pop %v1010
    %v1012 = vmul.f32 %v1006, 1.442695
    %v1013 = vpow.pop %v1012
    %v1014 = vmul.f32 %v1007, 1.442695
    %v1015 = vpow.pop %v1014
    %1020 = vrot.lane.b32.xlu0 %v1009, 120
    %v1021 = vpop.permute.xlu0 %1020
    %1022 = vrot.lane.b32.xlu0 %v1011, 120
    %v1023 = vpop.permute.xlu0 %1022
    %1024 = vrot.lane.b32.xlu0 %v1013, 120
    %v1025 = vpop.permute.xlu0 %1024
    %1026 = vrot.lane.b32.xlu0 %v1015, 120
    %v1027 = vpop.permute.xlu0 %1026
    %v1032 = vsel %vm880, %v1021, 0.0
    %1033 = vadd.xlane.f32.xlu0 %v1032
    %v1034 = vpop.xlane.xlu0 %1033
    %v1035 = vsel %vm880, %v1023, 0.0
    %1036 = vadd.xlane.f32.xlu0 %v1035
    %v1037 = vpop.xlane.xlu0 %1036
    %v1038 = vsel %vm880, %v1025, 0.0
    %1039 = vadd.xlane.f32.xlu0 %v1038
    %v1040 = vpop.xlane.xlu0 %1039
    %v1041 = vsel %vm880, %v1027, 0.0
    %1042 = vadd.xlane.f32.xlu0 %v1041
    %v1043 = vpop.xlane.xlu0 %1042
    %v1044 = vadd.f32 %v1034, %v1037
    %v1045 = vrot.slane %v1044, 4
    %v1046 = vadd.f32 %v1044, %v1045
    %v1047 = vrot.slane %v1046, 2
    %v1048 = vadd.f32 %v1046, %v1047
    %v1049 = vrot.slane %v1048, 1
    %v1050 = vadd.f32 %v1048, %v1049
    %v1051 = vadd.f32 %v1040, %v1043
    %v1052 = vrot.slane %v1051, 4
    %v1053 = vadd.f32 %v1051, %v1052
    %v1054 = vrot.slane %v1053, 2
    %v1055 = vadd.f32 %v1053, %v1054
    %v1056 = vrot.slane %v1055, 1
    %v1057 = vadd.f32 %v1055, %v1056
    %v1058 = vrcp.pop %v1050
    %v1059 = vmul.f32 %v1050, %v1058
    %v1060 = vsub.f32 1.0, %v1059
    %v1061 = vmul.f32 %v1058, %v1060
    %v1062 = vadd.f32 %v1058, %v1061
    %vm1063 = vweird.f32 %v1050
    %vm1064 = vweird.f32 %v1058
    %vm1065 = vmor %vm1063, %vm1064
    %v1066 = vsel %vm1065, %v1058, %v1062
    %v1067 = vand.u32 2147483647, %v1050
    %vm1068 = vcmp.eq.f32.partialorder %v1067, 8.507059e+37
    %v1069 = vand.u32 %v1050, 2147483648
    %v1070 = vor.u32 1.1754944e-38, %v1069
    %v1071 = vsel %vm1068, %v1070, %v1066
    %v1072 = vmul.f32 %v1009, %v1071
    %v1073 = vmul.f32 %v1011, %v1071
    %v1074 = vrcp.pop %v1057
    %v1075 = vmul.f32 %v1057, %v1074
    %v1076 = vsub.f32 1.0, %v1075
    %v1077 = vmul.f32 %v1074, %v1076
    %v1078 = vadd.f32 %v1074, %v1077
    %vm1079 = vweird.f32 %v1057
    %vm1080 = vweird.f32 %v1074
    %vm1081 = vmor %vm1079, %vm1080
    %v1082 = vsel %vm1081, %v1074, %v1078
    %v1083 = vand.u32 2147483647, %v1057
    %vm1084 = vcmp.eq.f32.partialorder %v1083, 8.507059e+37
    %v1085 = vand.u32 %v1057, 2147483648
    %v1086 = vor.u32 1.1754944e-38, %v1085
    %v1087 = vsel %vm1084, %v1086, %v1082
    %v1088 = vmul.f32 %v1013, %v1087
    %v1089 = vmul.f32 %v1015, %v1087
    %v1090 = vld [vmem:[#allocation7 + $0x68] sm:$0x3]
    %v1091 = vld [vmem:[#allocation7 + $0x70] sm:$0xff]
    %v1092 = vld [vmem:[#allocation7 + $0x78] sm:$0xff]
    %v1093 = vld [vmem:[#allocation7 + $0x80] sm:$0xff]
    %v1094 = vld [vmem:[#allocation7 + $0x88] sm:$0xff]
    %1095 = vmatpush.msra.mxu0 0.0
    %1096 = vmatpush.msra.mxu0 0.0
    %1097 = vmatpush.msra.mxu0 0.0
    %1098 = vmatpush.msra.mxu0 0.0
    %1099 = vmatpush.msra.mxu0 0.0
    %1100 = vmatpush.msra.mxu0 0.0
    %1101 = vmatpush.msra.mxu0 0.0
    %1102 = vmatpush.msra.mxu0 0.0
    %1103 = vmatpush.msra.mxu0 0.0
    %1104 = vmatpush.msra.mxu0 0.0
    %1105 = vmatpush.msra.mxu0 0.0
    %1106 = vmatpush.msra.mxu0 0.0
    %1107 = vmatpush.msra.mxu0 %v1094
    %1108 = vmatpush.msra.mxu0 %v1093
    %1109 = vmatpush.msra.mxu0 %v1092
    %1110 = vmatpush.msra.mxu0 %v1091
    %1111 = vmatmul.f32.gmra.mxu0 %v742
    %v1112 = vpop.f32.mrf.mxu0
    %v1113 = vadd.f32 0.0, %v1112
    %1114 = vmatmul.f32.gmra.mxu0 %v744
    %v1115 = vpop.f32.mrf.mxu0
    %v1116 = vadd.f32 0.0, %v1115
    %1117 = vdwg.mxu0
    %v1118 = vmax.f32 %v1113, 0.0
    %v1119 = vmax.f32 %v1116, 0.0
    %v1121 = vsel %vm880, %v959, 0
    %v1124 = vsel %vm880, %v960, 0
    %1126 = vmatpush.msra.mxu0 0.0
    %1127 = vmatpush.msra.mxu0 0.0
    %1128 = vmatpush.msra.mxu0 0.0
    %1129 = vmatpush.msra.mxu0 0.0
    %1130 = vmatpush.msra.mxu0 0.0
    %1131 = vmatpush.msra.mxu0 0.0
    %1132 = vmatpush.msra.mxu0 0.0
    %1133 = vmatpush.msra.mxu0 0.0
    %1134 = vmatpush.msra.mxu0 0.0
    %1135 = vmatpush.msra.mxu0 0.0
    %1136 = vmatpush.msra.mxu0 0.0
    %1137 = vmatpush.msra.mxu0 0.0
    %1138 = vmatpush.msra.mxu0 0.0
    %1139 = vmatpush.msra.mxu0 0.0
    %1140 = vmatpush.msra.mxu0 0.0
    %1141 = vmatpush.msra.mxu0 %v1118
    %1142 = vmatmul.f32.gmra.mxu0 %v1121
    %v1143 = vpop.f32.mrf.mxu0
    %v1144 = vadd.f32 0.0, %v1143
    %1145 = vmatmul.f32.gmra.mxu0 %v1124
    %v1146 = vpop.f32.mrf.mxu0
    %v1147 = vadd.f32 0.0, %v1146
    %1148 = vdwg.mxu0
    %v1150 = vsel %vm880, %v975, 0
    %v1153 = vsel %vm880, %v976, 0
    %1155 = vmatpush.msra.mxu0 0.0
    %1156 = vmatpush.msra.mxu0 0.0
    %1157 = vmatpush.msra.mxu0 0.0
    %1158 = vmatpush.msra.mxu0 0.0
    %1159 = vmatpush.msra.mxu0 0.0
    %1160 = vmatpush.msra.mxu0 0.0
    %1161 = vmatpush.msra.mxu0 0.0
    %1162 = vmatpush.msra.mxu0 0.0
    %1163 = vmatpush.msra.mxu0 0.0
    %1164 = vmatpush.msra.mxu0 0.0
    %1165 = vmatpush.msra.mxu0 0.0
    %1166 = vmatpush.msra.mxu0 0.0
    %1167 = vmatpush.msra.mxu0 0.0
    %1168 = vmatpush.msra.mxu0 0.0
    %1169 = vmatpush.msra.mxu0 0.0
    %1170 = vmatpush.msra.mxu0 %v1119
    %1171 = vmatmul.f32.gmra.mxu0 %v1150
    %v1172 = vpop.f32.mrf.mxu0
    %v1173 = vadd.f32 0.0, %v1172
    %1174 = vmatmul.f32.gmra.mxu0 %v1153
    %v1175 = vpop.f32.mrf.mxu0
    %v1176 = vadd.f32 0.0, %v1175
    %1177 = vdwg.mxu0
    %1182 = vrot.lane.b32.xlu0 %v1144, 64
    %v1183 = vpop.permute.xlu0 %1182
    %1184 = vrot.lane.b32.xlu0 %v1147, 64
    %v1185 = vpop.permute.xlu0 %1184
    %1186 = vrot.lane.b32.xlu0 %v1173, 64
    %v1187 = vpop.permute.xlu0 %1186
    %1188 = vrot.lane.b32.xlu0 %v1176, 64
    %v1189 = vpop.permute.xlu0 %1188
    %v1194 = vmul.f32 %v781, %v1183
    %v1195 = vmul.f32 %v782, %v1185
    %v1196 = vmul.f32 %v783, %v1187
    %v1197 = vmul.f32 %v784, %v1189
    %vm1198 = vcmask 785920
    %v1199 = vsel %vm1198, %v1194, 0.0
    %v1200 = vsel %vm1198, %v1195, 0.0
    %v1201 = vadd.f32 %v1199, %v1200
    %v1202 = vrot.slane %v1201, 4
    %v1203 = vadd.f32 %v1201, %v1202
    %v1204 = vrot.slane %v1203, 2
    %v1205 = vadd.f32 %v1203, %v1204
    %v1206 = vrot.slane %v1205, 1
    %v1207 = vadd.f32 %v1205, %v1206
    %v1208 = vsel %vm1198, %v1196, 0.0
    %v1209 = vsel %vm1198, %v1197, 0.0
    %v1210 = vadd.f32 %v1208, %v1209
    %v1211 = vrot.slane %v1210, 4
    %v1212 = vadd.f32 %v1210, %v1211
    %v1213 = vrot.slane %v1212, 2
    %v1214 = vadd.f32 %v1212, %v1213
    %v1215 = vrot.slane %v1214, 1
    %v1216 = vadd.f32 %v1214, %v1215
    %v1217 = vperm.slane %v1090, 0
    %vm1220 = vcmask 1041409
    %v1221 = vsel %vm1220, %v1216, %v1207
    %1222 = vrot.lane.b32.xlu0 %v1221, 64
    %v1223 = vpop.permute.xlu0 %1222
    %1228 = vrot.lane.b32.xlu0 %v1091, 96
    %v1229 = vpop.permute.xlu0 %1228
    %1230 = vrot.lane.b32.xlu0 %v1092, 96
    %v1231 = vpop.permute.xlu0 %1230
    %1232 = vrot.lane.b32.xlu0 %v1093, 96
    %v1233 = vpop.permute.xlu0 %1232
    %1234 = vrot.lane.b32.xlu0 %v1094, 96
    %v1235 = vpop.permute.xlu0 %1234
    %v1240 = vsel %vm77, %v1223, 0
    %1242 = vmatpush.msra.mxu0 0.0
    %1243 = vmatpush.msra.mxu0 0.0
    %1244 = vmatpush.msra.mxu0 0.0
    %1245 = vmatpush.msra.mxu0 0.0
    %1246 = vmatpush.msra.mxu0 0.0
    %1247 = vmatpush.msra.mxu0 0.0
    %1248 = vmatpush.msra.mxu0 0.0
    %1249 = vmatpush.msra.mxu0 0.0
    %1250 = vmatpush.msra.mxu0 0.0
    %1251 = vmatpush.msra.mxu0 0.0
    %1252 = vmatpush.msra.mxu0 0.0
    %1253 = vmatpush.msra.mxu0 0.0
    %1254 = vmatpush.msra.mxu0 %v1235
    %1255 = vmatpush.msra.mxu0 %v1233
    %1256 = vmatpush.msra.mxu0 %v1231
    %1257 = vmatpush.msra.mxu0 %v1229
    %1258 = vmatmul.f32.gmra.mxu0 %v1240
    %v1259 = vpop.f32.mrf.mxu0
    %v1260 = vadd.f32 %v1217, %v1259
    %1261 = vdwg.mxu0
    %v1262 = vmax.f32 %v1260, 0.0
    %v1264 = vrot.slane %v1262, 1
    %v1265 = vperm.slane %v1262, 0
    %v1266 = vperm.slane %v1264, 0
    %1267 = vrot.lane.b32.xlu0 %v1265, 32
    %v1268 = vpop.permute.xlu0 %1267
    %1269 = vrot.lane.b32.xlu0 %v1266, 32
    %v1270 = vpop.permute.xlu0 %1269
    %v1273 = vadd.f32 %v714, %v1268
    %v1274 = vadd.f32 %v715, %v1270
    %1277 = vrot.lane.b32.xlu0 %v1273, 96
    %v1278 = vpop.permute.xlu0 %1277
    %1279 = vrot.lane.b32.xlu0 %v1274, 96
    %v1280 = vpop.permute.xlu0 %1279
    %1281 = vrot.lane.b32.xlu0 %v1091, 64
    %v1282 = vpop.permute.xlu0 %1281
    %1283 = vrot.lane.b32.xlu0 %v1092, 64
    %v1284 = vpop.permute.xlu0 %1283
    %1285 = vrot.lane.b32.xlu0 %v1093, 64
    %v1286 = vpop.permute.xlu0 %1285
    %1287 = vrot.lane.b32.xlu0 %v1094, 64
    %v1288 = vpop.permute.xlu0 %1287
    %v1293 = vsel %vm77, %v1278, 0
    %v1295 = vsel %vm77, %v1280, 0
    %1297 = vmatpush.msra.mxu0 0.0
    %1298 = vmatpush.msra.mxu0 0.0
    %1299 = vmatpush.msra.mxu0 0.0
    %1300 = vmatpush.msra.mxu0 0.0
    %1301 = vmatpush.msra.mxu0 0.0
    %1302 = vmatpush.msra.mxu0 0.0
    %1303 = vmatpush.msra.mxu0 0.0
    %1304 = vmatpush.msra.mxu0 0.0
    %1305 = vmatpush.msra.mxu0 0.0
    %1306 = vmatpush.msra.mxu0 0.0
    %1307 = vmatpush.msra.mxu0 0.0
    %1308 = vmatpush.msra.mxu0 0.0
    %1309 = vmatpush.msra.mxu0 %v1288
    %1310 = vmatpush.msra.mxu0 %v1286
    %1311 = vmatpush.msra.mxu0 %v1284
    %1312 = vmatpush.msra.mxu0 %v1282
    %1313 = vmatmul.f32.gmra.mxu0 %v1293
    %v1314 = vpop.f32.mrf.mxu0
    %v1315 = vadd.f32 0.0, %v1314
    %1316 = vmatmul.f32.gmra.mxu0 %v1295
    %v1317 = vpop.f32.mrf.mxu0
    %v1318 = vadd.f32 0.0, %v1317
    %1319 = vdwg.mxu0
    %v1320 = vmax.f32 %v1315, 0.0
    %v1321 = vmax.f32 %v1318, 0.0
    %1324 = vrot.lane.b32.xlu0 %v1072, 120
    %v1325 = vpop.permute.xlu0 %1324
    %1326 = vrot.lane.b32.xlu0 %v1073, 120
    %v1327 = vpop.permute.xlu0 %1326
    %v1328 = vsel %vm880, %v1325, 0
    %v1330 = vsel %vm880, %v1327, 0
    %1332 = vmatpush.msra.mxu0 0.0
    %1333 = vmatpush.msra.mxu0 0.0
    %1334 = vmatpush.msra.mxu0 0.0
    %1335 = vmatpush.msra.mxu0 0.0
    %1336 = vmatpush.msra.mxu0 0.0
    %1337 = vmatpush.msra.mxu0 0.0
    %1338 = vmatpush.msra.mxu0 0.0
    %1339 = vmatpush.msra.mxu0 0.0
    %1340 = vmatpush.msra.mxu0 0.0
    %1341 = vmatpush.msra.mxu0 0.0
    %1342 = vmatpush.msra.mxu0 0.0
    %1343 = vmatpush.msra.mxu0 0.0
    %1344 = vmatpush.msra.mxu0 0.0
    %1345 = vmatpush.msra.mxu0 0.0
    %1346 = vmatpush.msra.mxu0 0.0
    %1347 = vmatpush.msra.mxu0 %v1320
    %1348 = vmatmul.f32.gmra.mxu0 %v1328
    %v1349 = vpop.f32.mrf.mxu0
    %v1350 = vadd.f32 0.0, %v1349
    %1351 = vmatmul.f32.gmra.mxu0 %v1330
    %v1352 = vpop.f32.mrf.mxu0
    %v1353 = vadd.f32 0.0, %v1352
    %1354 = vdwg.mxu0
    %1357 = vrot.lane.b32.xlu0 %v1088, 120
    %v1358 = vpop.permute.xlu0 %1357
    %1359 = vrot.lane.b32.xlu0 %v1089, 120
    %v1360 = vpop.permute.xlu0 %1359
    %v1361 = vsel %vm880, %v1358, 0
    %v1363 = vsel %vm880, %v1360, 0
    %1365 = vmatpush.msra.mxu0 0.0
    %1366 = vmatpush.msra.mxu0 0.0
    %1367 = vmatpush.msra.mxu0 0.0
    %1368 = vmatpush.msra.mxu0 0.0
    %1369 = vmatpush.msra.mxu0 0.0
    %1370 = vmatpush.msra.mxu0 0.0
    %1371 = vmatpush.msra.mxu0 0.0
    %1372 = vmatpush.msra.mxu0 0.0
    %1373 = vmatpush.msra.mxu0 0.0
    %1374 = vmatpush.msra.mxu0 0.0
    %1375 = vmatpush.msra.mxu0 0.0
    %1376 = vmatpush.msra.mxu0 0.0
    %1377 = vmatpush.msra.mxu0 0.0
    %1378 = vmatpush.msra.mxu0 0.0
    %1379 = vmatpush.msra.mxu0 0.0
    %1380 = vmatpush.msra.mxu0 %v1321
    %1381 = vmatmul.f32.gmra.mxu0 %v1361
    %v1382 = vpop.f32.mrf.mxu0
    %v1383 = vadd.f32 0.0, %v1382
    %1384 = vmatmul.f32.gmra.mxu0 %v1363
    %v1385 = vpop.f32.mrf.mxu0
    %v1386 = vadd.f32 0.0, %v1385
    %1387 = vdwg.mxu0
    %1392 = vrot.lane.b32.xlu0 %v1350, 96
    %v1393 = vpop.permute.xlu0 %1392
    %1394 = vrot.lane.b32.xlu0 %v1353, 96
    %v1395 = vpop.permute.xlu0 %1394
    %1396 = vrot.lane.b32.xlu0 %v1383, 96
    %v1397 = vpop.permute.xlu0 %1396
    %1398 = vrot.lane.b32.xlu0 %v1386, 96
    %v1399 = vpop.permute.xlu0 %1398
    %v1404 = vmul.f32 %v781, %v1393
    %v1405 = vmul.f32 %v782, %v1395
    %v1406 = vmul.f32 %v783, %v1397
    %v1407 = vmul.f32 %v784, %v1399
    %vm1408 = vcmask 1048320
    %v1409 = vsel %vm1408, %v1404, 0.0
    %v1410 = vsel %vm1408, %v1405, 0.0
    %v1411 = vadd.f32 %v1409, %v1410
    %v1412 = vrot.slane %v1411, 4
    %v1413 = vadd.f32 %v1411, %v1412
    %v1414 = vrot.slane %v1413, 2
    %v1415 = vadd.f32 %v1413, %v1414
    %v1416 = vrot.slane %v1415, 1
    %v1417 = vadd.f32 %v1415, %v1416
    %v1418 = vsel %vm1408, %v1406, 0.0
    %v1419 = vsel %vm1408, %v1407, 0.0
    %v1420 = vadd.f32 %v1418, %v1419
    %v1421 = vrot.slane %v1420, 4
    %v1422 = vadd.f32 %v1420, %v1421
    %v1423 = vrot.slane %v1422, 2
    %v1424 = vadd.f32 %v1422, %v1423
    %v1425 = vrot.slane %v1424, 1
    %v1426 = vadd.f32 %v1424, %v1425
    %v1427 = vperm.slane %v1090, 1
    %v1430 = vsel %vm1220, %v1426, %v1417
    %1431 = vrot.lane.b32.xlu0 %v1430, 32
    %v1432 = vpop.permute.xlu0 %1431
    %1433 = vrot.lane.b32.xlu0 %v1091, 32
    %v1434 = vpop.permute.xlu0 %1433
    %1435 = vrot.lane.b32.xlu0 %v1092, 32
    %v1436 = vpop.permute.xlu0 %1435
    %1437 = vrot.lane.b32.xlu0 %v1093, 32
    %v1438 = vpop.permute.xlu0 %1437
    %1439 = vrot.lane.b32.xlu0 %v1094, 32
    %v1440 = vpop.permute.xlu0 %1439
    %v1445 = vsel %vm77, %v1432, 0
    %1447 = vmatpush.msra.mxu0 0.0
    %1448 = vmatpush.msra.mxu0 0.0
    %1449 = vmatpush.msra.mxu0 0.0
    %1450 = vmatpush.msra.mxu0 0.0
    %1451 = vmatpush.msra.mxu0 0.0
    %1452 = vmatpush.msra.mxu0 0.0
    %1453 = vmatpush.msra.mxu0 0.0
    %1454 = vmatpush.msra.mxu0 0.0
    %1455 = vmatpush.msra.mxu0 0.0
    %1456 = vmatpush.msra.mxu0 0.0
    %1457 = vmatpush.msra.mxu0 0.0
    %1458 = vmatpush.msra.mxu0 0.0
    %1459 = vmatpush.msra.mxu0 %v1440
    %1460 = vmatpush.msra.mxu0 %v1438
    %1461 = vmatpush.msra.mxu0 %v1436
    %1462 = vmatpush.msra.mxu0 %v1434
    %1463 = vmatmul.f32.gmra.mxu0 %v1445
    %v1464 = vpop.f32.mrf.mxu0
    %v1465 = vadd.f32 %v1427, %v1464
    %1466 = vdwg.mxu0
    %v1467 = vmax.f32 %v1465, 0.0
    %v1469 = vrot.slane %v1467, 1
    %v1470 = vperm.slane %v1467, 0
    %v1471 = vperm.slane %v1469, 0
    %1472 = vrot.lane.b32.xlu0 %v1470, 32
    %v1473 = vpop.permute.xlu0 %1472
    %1474 = vrot.lane.b32.xlu0 %v1471, 32
    %v1475 = vpop.permute.xlu0 %1474
    %v1478 = vadd.f32 %v1273, %v1473
    %v1479 = vadd.f32 %v1274, %v1475
    %vm1480 = vcmask 523520
    %v1481 = vsel %vm1480, %v1478, 0.0
    %v1482 = vrot.slane %v1481, 4
    %v1483 = vadd.f32 %v1481, %v1482
    %v1484 = vrot.slane %v1483, 2
    %v1485 = vadd.f32 %v1483, %v1484
    %v1486 = vrot.slane %v1485, 1
    %v1487 = vadd.f32 %v1485, %v1486
    %v1488 = vsel %vm1480, %v1479, 0.0
    %v1489 = vrot.slane %v1488, 4
    %v1490 = vadd.f32 %v1488, %v1489
    %v1491 = vrot.slane %v1490, 2
    %v1492 = vadd.f32 %v1490, %v1491
    %v1493 = vrot.slane %v1492, 1
    %v1494 = vadd.f32 %v1492, %v1493
    %v1497 = vsel %vm1220, %v1494, %v1487
    %1498 = vrot.lane.b32.xlu0 %v1497, 96
    %v1499 = vpop.permute.xlu0 %1498
    %vm1501 = vcmask 254976
    %1502 = vst.msk [vmem:[#allocation9] sm:$0x3] %vm1501, %v1499
    // Predicated region
    $region26: #{ban_forward.1} parent=1 // pred_check
      _
    $region27: #{ban_forward.1} parent=1 // pred_check_branch
      %1504 = sbr.rel (0) target = $region29
    $region28: #{ban_forward.1} parent=1 // pred_region
      %1506 = vsyncadd [#allocation4], 0
      %s1508 = sshll.u32 [#allocation9], 4
      %s1509 = int_to_ptr.vmem [resolvable:$true] %s1508
      %s1510 = sshll.u32 %s3, 4
      %s1511 = int_to_ptr.hbm [resolvable:$true] %s1510
      %1513 = dma.vmem_to_hbm [thread:$0]  %s1509, 32, %s1511, [#allocation4]
    $region29: #{ban_forward.1} parent=1 // pred_fallthru
      _
    // Predicated region
    $region30: #{ban_forward.1} parent=1 // pred_check
      _
    $region31: #{ban_forward.1} parent=1 // pred_check_branch
      %1515 = sbr.rel (0) target = $region33
    $region32: #{ban_forward.1} parent=1 // pred_region
      %1517 = dma.done [#allocation4], 32
    $region33: #{ban_forward.1} parent=1 // pred_fallthru
      _
    %1518 = vsyncpa [#allocation3], 1
    %1519 = vsyncpa [#allocation8], 1
    %1520 = vsyncpa [#allocation4], 1
    %1521 = vsyncpa [#allocation5], 1

</llo_original>
